<compile_context>
chip_gen: v7x
topology: tpu7x:2x2x1
jax: 0.10.0
libtpu: 0.0.40
codegen_flags: <defaults>
</compile_context>

<pallas_src>
import functools

import jax
import jax.numpy as jnp
from jax.experimental import pallas as pl
from jax.experimental.pallas import tpu as pltpu


_VMEM_LIMIT_BYTES = 40 * 1024 * 1024   # <= 64 MiB/TC on v7x; well under 128 MiB on v5e/v6e
_FUSE_VMEM_BUDGET = 24 * 1024 * 1024   # headroom for pipeline buffers / Mosaic internal scratch

_HAS_BUFFERED = hasattr(pl, "Buffered")


def _spec(block_shape, index_map, buffers=None):
    """BlockSpec helper; buffers=1 marks grid-invariant operands as single-buffered."""
    if buffers is not None and _HAS_BUFFERED:
        try:
            return pl.BlockSpec(block_shape, index_map,
                                pipeline_mode=pl.Buffered(buffers))
        except TypeError:   # older jax without pipeline_mode kwarg
            pass
    return pl.BlockSpec(block_shape, index_map)


def _round_up(v, m):
    return (v + m - 1) // m * m


def _pad2d(a, rows, cols):
    r, c = a.shape
    return jnp.pad(a, ((0, rows - r), (0, cols - c)))


# ---------------------------------------------------------------------------
# Kernels
# ---------------------------------------------------------------------------
def xw1_kernel(x_ref, w1_ref, d_ref, o_ref):
    """M1 row tile = d_rows * (X_tile @ W1)  (f32 MXU accumulation, bf16 store)."""
    xw = jnp.dot(x_ref[...], w1_ref[...], preferred_element_type=jnp.float32)
    o_ref[...] = (d_ref[...] * xw).astype(o_ref.dtype)


def _masked_log_softmax(z, num_classes):
    """log_softmax over the first `num_classes` lanes; padded lanes hold garbage."""
    lane = jax.lax.broadcasted_iota(jnp.int32, z.shape, dimension=1)
    valid = lane < num_classes
    m = jnp.max(jnp.where(valid, z, -jnp.inf), axis=-1, keepdims=True)
    s = z - m
    p = jnp.where(valid, jnp.exp(s), 0.0)
    return s - jnp.log(jnp.sum(p, axis=-1, keepdims=True))


def fused_gcn_kernel(d_ref, b_ref, m1_ref, b1_ref, w2_ref, b2_ref,
                     o_ref, m2_ref, acc_ref, *, tm, num_classes):
    """Both aggregations with binary int8 B fully resident in VMEM (read from HBM once).

    grid = (2, nt): phase 0 writes M2 = d * (relu(d*(B@M1)+b1) @ W2) into VMEM scratch;
    phase 1 computes log_softmax(d*(B@M2)+b2) for the same row tile.
    """
    p = pl.program_id(0)
    i = pl.program_id(1)
    n_pad = b_ref.shape[0]
    nk = n_pad // tm                      # static
    row0 = pl.multiple_of(i * tm, tm)
    d_rows = d_ref[...]                   # (tm, 1) f32

    def aggregate(m_ref):
        # acc = B[row0:row0+tm, :] @ M, f32 accumulation, K chunked by tm so the
        # int8 -> bf16 widen temporary stays small (B stays 1 byte/elem in VMEM).
        acc_ref[...] = jnp.zeros_like(acc_ref)

        def body(k, carry):
            col0 = pl.multiple_of(k * tm, tm)
            b_blk = b_ref[pl.ds(row0, tm), pl.ds(col0, tm)].astype(jnp.bfloat16)
            acc_ref[...] += jnp.dot(b_blk, m_ref[pl.ds(col0, tm), :],
                                    preferred_element_type=jnp.float32)
            return carry

        jax.lax.fori_loop(0, nk, body, 0)
        return acc_ref[...]

    @pl.when(p == 0)
    def _():
        h = jnp.maximum(d_rows * aggregate(m1_ref) + b1_ref[...], 0.0)   # f32
        hw2 = jnp.dot(h.astype(jnp.bfloat16), w2_ref[...],
                      preferred_element_type=jnp.float32)
        m2_ref[pl.ds(row0, tm), :] = (d_rows * hw2).astype(m2_ref.dtype)

    @pl.when(p == 1)
    def _():
        z = d_rows * aggregate(m2_ref) + b2_ref[...]
        o_ref[...] = _masked_log_softmax(z, num_classes).astype(o_ref.dtype)


def layer1_ktiled_kernel(b_ref, m1_ref, d_ref, b1_ref, w2_ref, o_ref, acc_ref):
    """Fallback (B streamed as int8 tiles): acc += B_tile @ M1_tile; finalize at last k."""
    k = pl.program_id(1)

    @pl.when(k == 0)
    def _():
        acc_ref[...] = jnp.zeros_like(acc_ref)

    acc_ref[...] += jnp.dot(b_ref[...].astype(jnp.bfloat16), m1_ref[...],
                            preferred_element_type=jnp.float32)

    @pl.when(k == pl.num_programs(1) - 1)
    def _():
        h = jnp.maximum(d_ref[...] * acc_ref[...] + b1_ref[...], 0.0)
        hw2 = jnp.dot(h.astype(jnp.bfloat16), w2_ref[...],
                      preferred_element_type=jnp.float32)
        o_ref[...] = (d_ref[...] * hw2).astype(o_ref.dtype)


def layer2_ktiled_kernel(b_ref, m2_ref, d_ref, b2_ref, o_ref, acc_ref, *, num_classes):
    k = pl.program_id(1)

    @pl.when(k == 0)
    def _():
        acc_ref[...] = jnp.zeros_like(acc_ref)

    acc_ref[...] += jnp.dot(b_ref[...].astype(jnp.bfloat16), m2_ref[...],
                            preferred_element_type=jnp.float32)

    @pl.when(k == pl.num_programs(1) - 1)
    def _():
        z = d_ref[...] * acc_ref[...] + b2_ref[...]
        o_ref[...] = _masked_log_softmax(z, num_classes).astype(o_ref.dtype)


# ---------------------------------------------------------------------------
# Wrapper
# ---------------------------------------------------------------------------
@functools.partial(jax.jit, static_argnames=("tm", "fuse"))
def gcn_forward(b_adj, d_inv_sqrt, x, w1, b1, w2, b2, *, tm=256, fuse=None):
    """2-layer GCN forward.  b_adj: (N,N) int8 binary A+I; d_inv_sqrt: (N,1) f32 deg^-1/2."""
    n, f_in = x.shape
    hid = w1.shape[1]
    c = w2.shape[1]

    # Tile / padding geometry (tm multiple of 128 keeps all dynamic slices lane aligned
    # and int8 blocks on their native (32,128) tiling).
    tm_eff = min(tm, _round_up(n, 128))
    assert tm_eff % 128 == 0, "tm must be a multiple of 128"
    n_pad = _round_up(n, tm_eff)
    nt = n_pad // tm_eff
    f_pad = _round_up(f_in, 128)
    pw = _round_up(max(hid, c), 128)      # common lane-dense width for hidden & class dims

    bf16, f32 = jnp.bfloat16, jnp.float32
    b_p = _pad2d(b_adj.astype(jnp.int8), n_pad, n_pad)           # binary, exact in int8
    d_p = _pad2d(d_inv_sqrt.reshape(n, 1).astype(f32), n_pad, 1)  # padded rows scale to 0
    x_p = _pad2d(x, n_pad, f_pad).astype(bf16)
    w1_p = _pad2d(w1, f_pad, pw).astype(bf16)
    w2_p = _pad2d(w2, pw, pw).astype(bf16)
    b1_p = _pad2d(b1.reshape(1, hid), 1, pw).astype(f32)
    b2_p = _pad2d(b2.reshape(1, c), 1, pw).astype(f32)

    cparams_rows = pltpu.CompilerParams(dimension_semantics=("parallel",),
                                        vmem_limit_bytes=_VMEM_LIMIT_BYTES)

    # ---- Pass 1: M1 = d * (X @ W1), row tiled over X (independent tiles -> megacore). ----
    m1 = pl.pallas_call(
        xw1_kernel,
        out_shape=jax.ShapeDtypeStruct((n_pad, pw), bf16),
        grid=(nt,),
        in_specs=[
            pl.BlockSpec((tm_eff, f_pad), lambda i: (i, 0)),
            _spec((f_pad, pw), lambda i: (0, 0), buffers=1),
            pl.BlockSpec((tm_eff, 1), lambda i: (i, 0)),
        ],
        out_specs=pl.BlockSpec((tm_eff, pw), lambda i: (i, 0)),
        compiler_params=cparams_rows,
    )(x_p, w1_p, d_p)

    if fuse is None:
        fused_bytes = (n_pad * n_pad                 # resident int8 B
                       + 2 * n_pad * pw * 2          # resident M1 + M2 scratch (bf16)
                       + pw * pw * 2                 # W2
                       + 3 * tm_eff * pw * 4         # acc scratch + double-buffered f32 out
                       + 8 * tm_eff * pw)            # misc (d tiles, biases) headroom
        fuse = fused_bytes <= _FUSE_VMEM_BUDGET

    if fuse:
        # ---- Fused aggregation: B read from HBM once, M2 never leaves VMEM. ----
        # Phase axis must run sequentially (phase 1 consumes all of phase 0), so both grid
        # axes are "arbitrary"; the int8 + read-once bandwidth win dominates since the
        # kernel is HBM bound.
        out_p = pl.pallas_call(
            functools.partial(fused_gcn_kernel, tm=tm_eff, num_classes=c),
            out_shape=jax.ShapeDtypeStruct((n_pad, pw), f32),
            grid=(2, nt),
            in_specs=[
                pl.BlockSpec((tm_eff, 1), lambda p, i: (i, 0)),          # d rows
                _spec((n_pad, n_pad), lambda p, i: (0, 0), buffers=1),   # B resident (int8)
                _spec((n_pad, pw), lambda p, i: (0, 0), buffers=1),      # M1 resident
                _spec((1, pw), lambda p, i: (0, 0), buffers=1),          # b1
                _spec((pw, pw), lambda p, i: (0, 0), buffers=1),         # W2
                _spec((1, pw), lambda p, i: (0, 0), buffers=1),          # b2
            ],
            # index i*p pins the out block at 0 during phase 0 so nothing is flushed to
            # HBM until the real (phase 1) values have been written.
            out_specs=pl.BlockSpec((tm_eff, pw), lambda p, i: (i * p, 0)),
            scratch_shapes=[pltpu.VMEM((n_pad, pw), bf16),     # M2 (d-scaled H @ W2)
                            pltpu.VMEM((tm_eff, pw), f32)],    # aggregation accumulator
            compiler_params=pltpu.CompilerParams(
                dimension_semantics=("arbitrary", "arbitrary"),
                vmem_limit_bytes=_VMEM_LIMIT_BYTES),
        )(d_p, b_p, m1, b1_p, w2_p, b2_p)
    else:
        # ---- Fallback: B streamed as int8 (tm, tk) tiles, K-tiled f32 accumulation. ----
        tk = tm_eff
        nk = n_pad // tk
        cparams_kt = pltpu.CompilerParams(dimension_semantics=("parallel", "arbitrary"),
                                          vmem_limit_bytes=_VMEM_LIMIT_BYTES)

        m2 = pl.pallas_call(
            layer1_ktiled_kernel,
            out_shape=jax.ShapeDtypeStruct((n_pad, pw), bf16),
            grid=(nt, nk),
            in_specs=[
                pl.BlockSpec((tm_eff, tk), lambda i, k: (i, k)),
                pl.BlockSpec((tk, pw), lambda i, k: (k, 0)),
                pl.BlockSpec((tm_eff, 1), lambda i, k: (i, 0)),
                _spec((1, pw), lambda i, k: (0, 0), buffers=1),
                _spec((pw, pw), lambda i, k: (0, 0), buffers=1),
            ],
            out_specs=pl.BlockSpec((tm_eff, pw), lambda i, k: (i, 0)),
            scratch_shapes=[pltpu.VMEM((tm_eff, pw), f32)],
            compiler_params=cparams_kt,
        )(b_p, m1, d_p, b1_p, w2_p)

        out_p = pl.pallas_call(
            functools.partial(layer2_ktiled_kernel, num_classes=c),
            out_shape=jax.ShapeDtypeStruct((n_pad, pw), f32),
            grid=(nt, nk),
            in_specs=[
                pl.BlockSpec((tm_eff, tk), lambda i, k: (i, k)),
                pl.BlockSpec((tk, pw), lambda i, k: (k, 0)),
                pl.BlockSpec((tm_eff, 1), lambda i, k: (i, 0)),
                _spec((1, pw), lambda i, k: (0, 0), buffers=1),
            ],
            out_specs=pl.BlockSpec((tm_eff, pw), lambda i, k: (i, 0)),
            scratch_shapes=[pltpu.VMEM((tm_eff, pw), f32)],
            compiler_params=cparams_kt,
        )(b_p, m2, d_p, b2_p)

    return out_p[:n, :c]


# ---------------------------------------------------------------------------
# Plain-JAX glue + reference
# ---------------------------------------------------------------------------
def build_graph(edge_index, num_nodes):
    """Binary B = A + I (int8) and d = deg^-1/2 so that A_hat = diag(d) B diag(d).

    Matches GCNConv's symmetric normalization with self loops (edge weights all 1).
    """
    src, dst = edge_index[0], edge_index[1]
    adj = jnp.zeros((num_nodes, num_nodes), dtype=jnp.float32)
    adj = adj.at[src, dst].set(1.0)
    adj = adj.at[dst, src].set(1.0)                                  # undirected, like Cora
    adj = jnp.maximum(adj, jnp.eye(num_nodes, dtype=jnp.float32))    # self loops, weight 1
    deg = jnp.sum(adj, axis=1)
    d_inv_sqrt = jnp.where(deg > 0, 1.0 / jnp.sqrt(deg), 0.0)
    return adj.astype(jnp.int8), d_inv_sqrt.reshape(num_nodes, 1)


def glorot(key, shape):
    fan_in, fan_out = shape
    limit = jnp.sqrt(6.0 / (fan_in + fan_out))
    return jax.random.uniform(key, shape, jnp.float32, -limit, limit)


def reference_forward(b_adj, d_inv_sqrt, x, w1, b1, w2, b2):
    """Mirrors kernel numerics: exact int8/binary B, f32 diag scales, bf16 MXU operands.

    NOTE: against a true f32 PyTorch GCN the bf16 operand rounding may exceed 1e-3 on
    the log-probs; argmax/accuracy is unaffected at GCN scale.
    """
    bf16, f32 = jnp.bfloat16, jnp.float32
    d = d_inv_sqrt.astype(f32)
    bb = b_adj.astype(bf16)                                          # 0/1 -> exact
    m1 = (d * jnp.dot(x.astype(bf16), w1.astype(bf16),
                      preferred_element_type=f32)).astype(bf16)
    h = jnp.maximum(d * jnp.dot(bb, m1, preferred_element_type=f32) + b1, 0.0)
    m2 = (d * jnp.dot(h.astype(bf16), w2.astype(bf16),
                      preferred_element_type=f32)).astype(bf16)
    z = d * jnp.dot(bb, m2, preferred_element_type=f32) + b2
    return jax.nn.log_softmax(z, axis=1)


if __name__ == "__main__":
    # Synthetic small shapes consistent with the module: num_node_features -> 16 -> num_classes.
    N, F_IN, HID, C, E = 256, 48, 16, 8, 1024

    key = jax.random.PRNGKey(0)
    k_x, k_e1, k_e2, k_w1, k_w2, k_b1, k_b2 = jax.random.split(key, 7)

    x = jax.random.normal(k_x, (N, F_IN), dtype=jnp.float32)
    edge_index = jnp.stack(
        [jax.random.randint(k_e1, (E,), 0, N),
         jax.random.randint(k_e2, (E,), 0, N)], axis=0)
    b_adj, d_inv_sqrt = build_graph(edge_index, N)

    # Parameters (GCNConv: glorot weights; biases non-zero to exercise the add).
    w1 = glorot(k_w1, (F_IN, HID))
    b1 = 0.1 * jax.random.normal(k_b1, (1, HID), dtype=jnp.float32)
    w2 = glorot(k_w2, (HID, C))
    b2 = 0.1 * jax.random.normal(k_b2, (1, C), dtype=jnp.float32)

    ref = reference_forward(b_adj, d_inv_sqrt, x, w1, b1, w2, b2)

    # Fused path (B resident in VMEM, read from HBM once). tm=128 -> 2 row tiles here;
    # use tm=256 on v7x and 512 on v5e/v6e at real graph scale.
    out = gcn_forward(b_adj, d_inv_sqrt, x, w1, b1, w2, b2, tm=128, fuse=True)
    out = jax.block_until_ready(out)
    assert out.shape == (N, C)
    assert jnp.allclose(out, ref, atol=1e-3, rtol=1e-3), "fused path mismatch vs JAX reference"

    # Streaming row + K tiled fallback (used when B does not fit VMEM) — exercised here too.
    out_tiled = gcn_forward(b_adj, d_inv_sqrt, x, w1, b1, w2, b2, tm=128, fuse=False)
    out_tiled = jax.block_until_ready(out_tiled)
    assert jnp.allclose(out_tiled, ref, atol=1e-3, rtol=1e-3), "tiled path mismatch vs JAX reference"

    print("KERNEL_OK")
</pallas_src>

<mosaic_0001>
module attributes {stable_mosaic.version = 11 : i64} {
  func.func @xw1_kernel(%arg0: i32, %arg1: memref<128x128xbf16, #tpu.memory_space<vmem>>, %arg2: memref<128x128xbf16, #tpu.memory_space<vmem>>, %arg3: memref<128x1xf32, #tpu.memory_space<vmem>>, %arg4: memref<128x128xbf16, #tpu.memory_space<vmem>>) attributes {dimension_semantics = [#tpu.dimension_semantics<parallel>], iteration_bounds = array<i64: 2>, scalar_prefetch = 0 : i64, scratch_operands = 0 : i64, tpu.core_type = #tpu.core_type<tc>, window_params = [{transform_indices = @transform_0, window_bounds = array<i64: 128, 128>}, {pipeline_mode = #tpu.pipeline_mode<synchronous>, transform_indices = @transform_1, window_bounds = array<i64: 128, 128>}, {transform_indices = @transform_2, window_bounds = array<i64: 128, 1>}, {transform_indices = @transform_3, window_bounds = array<i64: 128, 128>}]} {
    %c0 = arith.constant 0 : index
    %c0_0 = arith.constant 0 : index
    %0 = vector.load %arg1[%c0, %c0_0] : memref<128x128xbf16, #tpu.memory_space<vmem>>, vector<128x128xbf16>
    %c0_1 = arith.constant 0 : index
    %c0_2 = arith.constant 0 : index
    %1 = vector.load %arg2[%c0_1, %c0_2] : memref<128x128xbf16, #tpu.memory_space<vmem>>, vector<128x128xbf16>
    %cst = arith.constant dense<0.000000e+00> : vector<128x128xf32>
    %2 = tpu.matmul %0, %1, %cst {dimension_numbers = #tpu.dot_dimension_numbers<[1], [0], [0], [1], [0, 0, 1, 1], [], []>} : vector<128x128xbf16>, vector<128x128xbf16>, vector<128x128xf32> -> vector<128x128xf32>
    %c0_3 = arith.constant 0 : index
    %c0_4 = arith.constant 0 : index
    %3 = vector.load %arg3[%c0_3, %c0_4] : memref<128x1xf32, #tpu.memory_space<vmem>>, vector<128x1xf32>
    %4 = vector.broadcast %3 : vector<128x1xf32> to vector<128x128xf32>
    %5 = arith.mulf %4, %2 : vector<128x128xf32>
    %6 = arith.truncf %5 : vector<128x128xf32> to vector<128x128xbf16>
    %c0_5 = arith.constant 0 : index
    %c0_6 = arith.constant 0 : index
    %7 = vector.load %arg4[%c0_5, %c0_6] : memref<128x128xbf16, #tpu.memory_space<vmem>>, vector<128x128xbf16>
    tpu.vector_store %arg4[%c0_5, %c0_6], %6 {strides = array<i32>} : memref<128x128xbf16, #tpu.memory_space<vmem>>, vector<128x128xbf16>,
    return
  }
  func.func @transform_0(%arg0: i32) -> (i32, i32) {
    %c0_i32 = arith.constant 0 : i32
    %c0_i32_0 = arith.constant 0 : i32
    return %arg0, %c0_i32 : i32, i32
  }
  func.func @transform_1(%arg0: i32) -> (i32, i32) {
    %c0_i32 = arith.constant 0 : i32
    %c0_i32_0 = arith.constant 0 : i32
    %c0_i32_1 = arith.constant 0 : i32
    return %c0_i32, %c0_i32_0 : i32, i32
  }
  func.func @transform_2(%arg0: i32) -> (i32, i32) {
    %c0_i32 = arith.constant 0 : i32
    %c0_i32_0 = arith.constant 0 : i32
    return %arg0, %c0_i32 : i32, i32
  }
  func.func @transform_3(%arg0: i32) -> (i32, i32) {
    %c0_i32 = arith.constant 0 : i32
    %c0_i32_0 = arith.constant 0 : i32
    return %arg0, %c0_i32 : i32, i32
  }
}

module attributes {stable_mosaic.version = 11 : i64} {
  func.func @fused_gcn_kernel(%arg0: i32, %arg1: i32, %arg2: memref<128x1xf32, #tpu.memory_space<vmem>>, %arg3: memref<256x256xi8, #tpu.memory_space<vmem>>, %arg4: memref<256x128xbf16, #tpu.memory_space<vmem>>, %arg5: memref<1x128xf32, #tpu.memory_space<vmem>>, %arg6: memref<128x128xbf16, #tpu.memory_space<vmem>>, %arg7: memref<1x128xf32, #tpu.memory_space<vmem>>, %arg8: memref<128x128xf32, #tpu.memory_space<vmem>>, %arg9: memref<256x128xbf16, #tpu.memory_space<vmem>>, %arg10: memref<128x128xf32, #tpu.memory_space<vmem>>) attributes {dimension_semantics = [#tpu.dimension_semantics<arbitrary>, #tpu.dimension_semantics<arbitrary>], iteration_bounds = array<i64: 2, 2>, scalar_prefetch = 0 : i64, scratch_operands = 2 : i64, tpu.core_type = #tpu.core_type<tc>, window_params = [{transform_indices = @transform_0, window_bounds = array<i64: 128, 1>}, {pipeline_mode = #tpu.pipeline_mode<synchronous>, transform_indices = @transform_1, window_bounds = array<i64: 256, 256>}, {pipeline_mode = #tpu.pipeline_mode<synchronous>, transform_indices = @transform_2, window_bounds = array<i64: 256, 128>}, {pipeline_mode = #tpu.pipeline_mode<synchronous>, transform_indices = @transform_3, window_bounds = array<i64: 1, 128>}, {pipeline_mode = #tpu.pipeline_mode<synchronous>, transform_indices = @transform_4, window_bounds = array<i64: 128, 128>}, {pipeline_mode = #tpu.pipeline_mode<synchronous>, transform_indices = @transform_5, window_bounds = array<i64: 1, 128>}, {transform_indices = @transform_6, window_bounds = array<i64: 128, 128>}]} {
    %c128_i32 = arith.constant 128 : i32
    %0 = arith.muli %arg1, %c128_i32 : i32
    %1 = tpu.assume_multiple %0, 128 : i32
    %c0 = arith.constant 0 : index
    %c0_0 = arith.constant 0 : index
    %2 = vector.load %arg2[%c0, %c0_0] : memref<128x1xf32, #tpu.memory_space<vmem>>, vector<128x1xf32>
    %c0_i32 = arith.constant 0 : i32
    %3 = arith.cmpi eq, %arg0, %c0_i32 : i32
    %4 = arith.extui %3 : i1 to i32
    %c0_i32_1 = arith.constant 0 : i32
    %5 = arith.cmpi ne, %4, %c0_i32_1 : i32
    scf.if %5 {
      %cst = arith.constant 0.000000e+00 : f32
      %9 = vector.broadcast %cst : f32 to vector<128x128xf32>
      %c0_3 = arith.constant 0 : index
      %c0_4 = arith.constant 0 : index
      %10 = vector.load %arg10[%c0_3, %c0_4] : memref<128x128xf32, #tpu.memory_space<vmem>>, vector<128x128xf32>
      tpu.vector_store %arg10[%c0_3, %c0_4], %9 {strides = array<i32>} : memref<128x128xf32, #tpu.memory_space<vmem>>, vector<128x128xf32>,
      %c0_i32_5 = arith.constant 0 : i32
      %c2_i32 = arith.constant 2 : i32
      %11 = arith.addi %c0_i32_5, %c2_i32 : i32
      %c1_i32_6 = arith.constant 1 : i32
      scf.for %arg11 = %c0_i32_5 to %11 step %c1_i32_6  : i32 {
        %c128_i32_17 = arith.constant 128 : i32
        %28 = arith.muli %arg11, %c128_i32_17 : i32
        %29 = tpu.assume_multiple %28, 128 : i32
        %30 = arith.index_cast %1 : i32 to index
        %31 = arith.index_cast %29 : i32 to index
        %32 = vector.load %arg3[%30, %31] : memref<256x256xi8, #tpu.memory_space<vmem>>, vector<128x128xi8>
        %33 = arith.sitofp %32 : vector<128x128xi8> to vector<128x128xbf16>
        %c0_18 = arith.constant 0 : index
        %c0_19 = arith.constant 0 : index
        %34 = vector.load %arg10[%c0_18, %c0_19] : memref<128x128xf32, #tpu.memory_space<vmem>>, vector<128x128xf32>
        %35 = arith.index_cast %29 : i32 to index
        %c0_20 = arith.constant 0 : index
        %36 = vector.load %arg4[%35, %c0_20] : memref<256x128xbf16, #tpu.memory_space<vmem>>, vector<128x128xbf16>
        %cst_21 = arith.constant dense<0.000000e+00> : vector<128x128xf32>
        %37 = tpu.matmul %33, %36, %cst_21 {dimension_numbers = #tpu.dot_dimension_numbers<[1], [0], [0], [1], [0, 0, 1, 1], [], []>} : vector<128x128xbf16>, vector<128x128xbf16>, vector<128x128xf32> -> vector<128x128xf32>
        %38 = arith.addf %34, %37 : vector<128x128xf32>
        %c0_22 = arith.constant 0 : index
        %c0_23 = arith.constant 0 : index
        %39 = vector.load %arg10[%c0_22, %c0_23] : memref<128x128xf32, #tpu.memory_space<vmem>>, vector<128x128xf32>
        tpu.vector_store %arg10[%c0_22, %c0_23], %38 {strides = array<i32>} : memref<128x128xf32, #tpu.memory_space<vmem>>, vector<128x128xf32>,
      }
      %c2_i32_7 = arith.constant 2 : i32
      %c0_8 = arith.constant 0 : index
      %c0_9 = arith.constant 0 : index
      %12 = vector.load %arg10[%c0_8, %c0_9] : memref<128x128xf32, #tpu.memory_space<vmem>>, vector<128x128xf32>
      %13 = vector.broadcast %2 : vector<128x1xf32> to vector<128x128xf32>
      %14 = arith.mulf %13, %12 : vector<128x128xf32>
      %c0_10 = arith.constant 0 : index
      %c0_11 = arith.constant 0 : index
      %15 = vector.load %arg5[%c0_10, %c0_11] : memref<1x128xf32, #tpu.memory_space<vmem>>, vector<1x128xf32>
      %16 = vector.broadcast %15 : vector<1x128xf32> to vector<128x128xf32>
      %17 = arith.addf %14, %16 : vector<128x128xf32>
      %cst_12 = arith.constant 0.000000e+00 : f32
      %18 = vector.broadcast %cst_12 : f32 to vector<128x128xf32>
      %19 = arith.maximumf %17, %18 : vector<128x128xf32>
      %20 = arith.truncf %19 : vector<128x128xf32> to vector<128x128xbf16>
      %c0_13 = arith.constant 0 : index
      %c0_14 = arith.constant 0 : index
      %21 = vector.load %arg6[%c0_13, %c0_14] : memref<128x128xbf16, #tpu.memory_space<vmem>>, vector<128x128xbf16>
      %cst_15 = arith.constant dense<0.000000e+00> : vector<128x128xf32>
      %22 = tpu.matmul %20, %21, %cst_15 {dimension_numbers = #tpu.dot_dimension_numbers<[1], [0], [0], [1], [0, 0, 1, 1], [], []>} : vector<128x128xbf16>, vector<128x128xbf16>, vector<128x128xf32> -> vector<128x128xf32>
      %23 = vector.broadcast %2 : vector<128x1xf32> to vector<128x128xf32>
      %24 = arith.mulf %23, %22 : vector<128x128xf32>
      %25 = arith.truncf %24 : vector<128x128xf32> to vector<128x128xbf16>
      %26 = arith.index_cast %1 : i32 to index
      %c0_16 = arith.constant 0 : index
      %27 = vector.load %arg9[%26, %c0_16] : memref<256x128xbf16, #tpu.memory_space<vmem>>, vector<128x128xbf16>
      tpu.vector_store %arg9[%26, %c0_16], %25 {strides = array<i32>} : memref<256x128xbf16, #tpu.memory_space<vmem>>, vector<128x128xbf16>,
    } else {
    }
    %c1_i32 = arith.constant 1 : i32
    %6 = arith.cmpi eq, %arg0, %c1_i32 : i32
    %7 = arith.extui %6 : i1 to i32
    %c0_i32_2 = arith.constant 0 : i32
    %8 = arith.cmpi ne, %7, %c0_i32_2 : i32
    scf.if %8 {
      %cst = arith.constant 0.000000e+00 : f32
      %9 = vector.broadcast %cst : f32 to vector<128x128xf32>
      %c0_3 = arith.constant 0 : index
      %c0_4 = arith.constant 0 : index
      %10 = vector.load %arg10[%c0_3, %c0_4] : memref<128x128xf32, #tpu.memory_space<vmem>>, vector<128x128xf32>
      tpu.vector_store %arg10[%c0_3, %c0_4], %9 {strides = array<i32>} : memref<128x128xf32, #tpu.memory_space<vmem>>, vector<128x128xf32>,
      %c0_i32_5 = arith.constant 0 : i32
      %c2_i32 = arith.constant 2 : i32
      %11 = arith.addi %c0_i32_5, %c2_i32 : i32
      %c1_i32_6 = arith.constant 1 : i32
      scf.for %arg11 = %c0_i32_5 to %11 step %c1_i32_6  : i32 {
        %c128_i32_18 = arith.constant 128 : i32
        %36 = arith.muli %arg11, %c128_i32_18 : i32
        %37 = tpu.assume_multiple %36, 128 : i32
        %38 = arith.index_cast %1 : i32 to index
        %39 = arith.index_cast %37 : i32 to index
        %40 = vector.load %arg3[%38, %39] : memref<256x256xi8, #tpu.memory_space<vmem>>, vector<128x128xi8>
        %41 = arith.sitofp %40 : vector<128x128xi8> to vector<128x128xbf16>
        %c0_19 = arith.constant 0 : index
        %c0_20 = arith.constant 0 : index
        %42 = vector.load %arg10[%c0_19, %c0_20] : memref<128x128xf32, #tpu.memory_space<vmem>>, vector<128x128xf32>
        %43 = arith.index_cast %37 : i32 to index
        %c0_21 = arith.constant 0 : index
        %44 = vector.load %arg9[%43, %c0_21] : memref<256x128xbf16, #tpu.memory_space<vmem>>, vector<128x128xbf16>
        %cst_22 = arith.constant dense<0.000000e+00> : vector<128x128xf32>
        %45 = tpu.matmul %41, %44, %cst_22 {dimension_numbers = #tpu.dot_dimension_numbers<[1], [0], [0], [1], [0, 0, 1, 1], [], []>} : vector<128x128xbf16>, vector<128x128xbf16>, vector<128x128xf32> -> vector<128x128xf32>
        %46 = arith.addf %42, %45 : vector<128x128xf32>
        %c0_23 = arith.constant 0 : index
        %c0_24 = arith.constant 0 : index
        %47 = vector.load %arg10[%c0_23, %c0_24] : memref<128x128xf32, #tpu.memory_space<vmem>>, vector<128x128xf32>
        tpu.vector_store %arg10[%c0_23, %c0_24], %46 {strides = array<i32>} : memref<128x128xf32, #tpu.memory_space<vmem>>, vector<128x128xf32>,
      }
      %c2_i32_7 = arith.constant 2 : i32
      %c0_8 = arith.constant 0 : index
      %c0_9 = arith.constant 0 : index
      %12 = vector.load %arg10[%c0_8, %c0_9] : memref<128x128xf32, #tpu.memory_space<vmem>>, vector<128x128xf32>
      %13 = vector.broadcast %2 : vector<128x1xf32> to vector<128x128xf32>
      %14 = arith.mulf %13, %12 : vector<128x128xf32>
      %c0_10 = arith.constant 0 : index
      %c0_11 = arith.constant 0 : index
      %15 = vector.load %arg7[%c0_10, %c0_11] : memref<1x128xf32, #tpu.memory_space<vmem>>, vector<1x128xf32>
      %16 = vector.broadcast %15 : vector<1x128xf32> to vector<128x128xf32>
      %17 = arith.addf %14, %16 : vector<128x128xf32>
      %18 = tpu.iota {dimensions = array<i32: 1>} : vector<128x128xi32>
      %c8_i32 = arith.constant 8 : i32
      %19 = vector.broadcast %c8_i32 : i32 to vector<128x128xi32>
      %20 = arith.cmpi slt, %18, %19 : vector<128x128xi32>
      %cst_12 = arith.constant 0xFF800000 : f32
      %21 = vector.broadcast %cst_12 : f32 to vector<128x128xf32>
      %22 = arith.select %20, %17, %21 : vector<128x128xi1>, vector<128x128xf32>
      %cst_13 = arith.constant dense<0xFF800000> : vector<128xf32>
      %23 = vector.multi_reduction <maximumf>, %22, %cst_13 [1] : vector<128x128xf32> to vector<128xf32>
      %24 = vector.shape_cast %23 : vector<128xf32> to vector<128x1xf32>
      %25 = vector.broadcast %24 : vector<128x1xf32> to vector<128x128xf32>
      %26 = arith.subf %17, %25 : vector<128x128xf32>
      %27 = math.exp %26 : vector<128x128xf32>
      %cst_14 = arith.constant 0.000000e+00 : f32
      %28 = vector.broadcast %cst_14 : f32 to vector<128x128xf32>
      %29 = arith.select %20, %27, %28 : vector<128x128xi1>, vector<128x128xf32>
      %cst_15 = arith.constant dense<0.000000e+00> : vector<128xf32>
      %30 = vector.multi_reduction <add>, %29, %cst_15 [1] : vector<128x128xf32> to vector<128xf32>
      %31 = vector.shape_cast %30 : vector<128xf32> to vector<128x1xf32>
      %32 = math.log %31 : vector<128x1xf32>
      %33 = vector.broadcast %32 : vector<128x1xf32> to vector<128x128xf32>
      %34 = arith.subf %26, %33 : vector<128x128xf32>
      %c0_16 = arith.constant 0 : index
      %c0_17 = arith.constant 0 : index
      %35 = vector.load %arg8[%c0_16, %c0_17] : memref<128x128xf32, #tpu.memory_space<vmem>>, vector<128x128xf32>
      tpu.vector_store %arg8[%c0_16, %c0_17], %34 {strides = array<i32>} : memref<128x128xf32, #tpu.memory_space<vmem>>, vector<128x128xf32>,
    } else {
    }
    return
  }
  func.func @transform_0(%arg0: i32, %arg1: i32) -> (i32, i32) {
    %c0_i32 = arith.constant 0 : i32
    %c0_i32_0 = arith.constant 0 : i32
    return %arg1, %c0_i32 : i32, i32
  }
  func.func @transform_1(%arg0: i32, %arg1: i32) -> (i32, i32) {
    %c0_i32 = arith.constant 0 : i32
    %c0_i32_0 = arith.constant 0 : i32
    %c0_i32_1 = arith.constant 0 : i32
    return %c0_i32, %c0_i32_0 : i32, i32
  }
  func.func @transform_2(%arg0: i32, %arg1: i32) -> (i32, i32) {
    %c0_i32 = arith.constant 0 : i32
    %c0_i32_0 = arith.constant 0 : i32
    %c0_i32_1 = arith.constant 0 : i32
    return %c0_i32, %c0_i32_0 : i32, i32
  }
  func.func @transform_3(%arg0: i32, %arg1: i32) -> (i32, i32) {
    %c0_i32 = arith.constant 0 : i32
    %c0_i32_0 = arith.constant 0 : i32
    %c0_i32_1 = arith.constant 0 : i32
    return %c0_i32, %c0_i32_0 : i32, i32
  }
  func.func @transform_4(%arg0: i32, %arg1: i32) -> (i32, i32) {
    %c0_i32 = arith.constant 0 : i32
    %c0_i32_0 = arith.constant 0 : i32
    %c0_i32_1 = arith.constant 0 : i32
    return %c0_i32, %c0_i32_0 : i32, i32
  }
  func.func @transform_5(%arg0: i32, %arg1: i32) -> (i32, i32) {
    %c0_i32 = arith.constant 0 : i32
    %c0_i32_0 = arith.constant 0 : i32
    %c0_i32_1 = arith.constant 0 : i32
    return %c0_i32, %c0_i32_0 : i32, i32
  }
  func.func @transform_6(%arg0: i32, %arg1: i32) -> (i32, i32) {
    %0 = arith.muli %arg1, %arg0 : i32
    %c0_i32 = arith.constant 0 : i32
    %c0_i32_0 = arith.constant 0 : i32
    return %0, %c0_i32 : i32, i32
  }
}

</mosaic_0001>

<llo_original>
// kernel: gcn_forward.2
$region0: #{gcn_forward.2}
  #allocation0 [shape = 'u32[]', space=smem, size = 0x4, offset = 0x4, fixed_abs, tag = 'smem constant byte address 0x4 - core index']
  #allocation1 [shape = 'u32[144,128]{1,0:T(1,128)}', space=vmem, size = 0x12000, scoped, tag = 'internal scratch']
  %s0 = inlined_call_operand.vmem [shape: bf16[256,128], index: 0, kind: input, shape index: {}]
  %s1 = inlined_call_operand.vmem [shape: bf16[128,128], index: 1, kind: input, shape index: {}]
  %s2 = inlined_call_operand.vmem [shape: f32[256,1], index: 2, kind: input, shape index: {}]
  %s3 = inlined_call_operand.vmem [shape: bf16[256,128], index: 3, kind: output, shape index: {}]
  %s4 = sld [smem:[#allocation0]]
  $region45: #{gcn_forward.2} parent=0
    _
  %s6 = ssub.s32 1, %s4
  %s7 = scalar_select 0, %s6, %s4
  loop: start=0, step=1, limit=4
  $region2: #{gcn_forward.2} parent=0 // loop_pre_header
    _
  $region3: #{gcn_forward.2} parent=0 // loop_header
    %s9 = sphi 0, %s13
    %p10 = scmp.ge.s32.totalorder %s9, 4
    %s19 = sphi 0, %s21
    %s22 = sphi 0, %s19
    %s23 = sphi 0, %s22
    %s39 = sphi 0, %s23
    %s43 = sphi 0, %s43
    %s45 = sphi 0, %s43
    %s46 = sphi 0, %s45
    %s60 = sphi 0, %s46
    %s66 = sphi 0, %s68
    %s69 = sphi 0, %s66
    %s70 = sphi 0, %s69
    %s86 = sphi 0, %s70
    %s92 = sphi 0, %s94
    %s95 = sphi 0, %s92
    %s96 = sphi 0, %s95
    %s112 = sphi 0, %s96
  $region4: #{gcn_forward.2} parent=0 // loop_header_branch
    %12 = sbr.rel (%p10) target = $region8
  $region5: #{gcn_forward.2} parent=0 // loop_body
    %s14 = ssub.s32 %s9, 1
    %s15 = ssub.s32 %s9, 2
    %s16 = sadd.s32 %s9, 1
    %s17 = ssub.s32 %s9, %s16
    %p18 = scmp.eq.s32.totalorder %s17, 0
    %s20 = sadd.s32 %s19, 1
    %s21 = scalar_select %p18, %s19, %s20
    %p24 = pneg %p18
    %p25 = scmp.eq.s32.totalorder %s9, 1
    %p26 = por %p24, %p25
    %p27 = scmp.ne.s32.totalorder %s19, %s22
    %p28 = scmp.eq.s32.totalorder %s9, 0
    %p29 = por %p27, %p28
    %p30 = scmp.ne.s32.totalorder %s19, %s22
    %p31 = scmp.eq.s32.totalorder %s14, 1
    %p32 = por %p30, %p31
    %p33 = scmp.ne.s32.totalorder %s22, %s23
    %p34 = scmp.eq.s32.totalorder %s14, 0
    %p35 = por %p33, %p34
    %p36 = scmp.ne.s32.totalorder %s22, %s23
    %p37 = scmp.eq.s32.totalorder %s15, 1
    %p38 = por %p36, %p37
    %p40 = scmp.ne.s32.totalorder %s23, %s39
    %p41 = scmp.eq.s32.totalorder %s15, 0
    %p42 = por %p40, %p41
    %s44 = sadd.s32 %s43, 1
    %p47 = scmp.eq.s32.totalorder %s9, 1
    %p48 = scmp.ne.s32.totalorder %s43, %s45
    %p49 = scmp.eq.s32.totalorder %s9, 0
    %p50 = por %p48, %p49
    %p51 = scmp.ne.s32.totalorder %s43, %s45
    %p52 = scmp.eq.s32.totalorder %s14, 1
    %p53 = por %p51, %p52
    %p54 = scmp.ne.s32.totalorder %s45, %s46
    %p55 = scmp.eq.s32.totalorder %s14, 0
    %p56 = por %p54, %p55
    %p57 = scmp.ne.s32.totalorder %s45, %s46
    %p58 = scmp.eq.s32.totalorder %s15, 1
    %p59 = por %p57, %p58
    %p61 = scmp.ne.s32.totalorder %s46, %s60
    %p62 = scmp.eq.s32.totalorder %s15, 0
    %p63 = por %p61, %p62
    %s64 = ssub.s32 %s9, %s16
    %p65 = scmp.eq.s32.totalorder %s64, 0
    %s67 = sadd.s32 %s66, 1
    %s68 = scalar_select %p65, %s66, %s67
    %p71 = pneg %p65
    %p72 = scmp.eq.s32.totalorder %s9, 1
    %p73 = por %p71, %p72
    %p74 = scmp.ne.s32.totalorder %s66, %s69
    %p75 = scmp.eq.s32.totalorder %s9, 0
    %p76 = por %p74, %p75
    %p77 = scmp.ne.s32.totalorder %s66, %s69
    %p78 = scmp.eq.s32.totalorder %s14, 1
    %p79 = por %p77, %p78
    %p80 = scmp.ne.s32.totalorder %s69, %s70
    %p81 = scmp.eq.s32.totalorder %s14, 0
    %p82 = por %p80, %p81
    %p83 = scmp.ne.s32.totalorder %s69, %s70
    %p84 = scmp.eq.s32.totalorder %s15, 1
    %p85 = por %p83, %p84
    %p87 = scmp.ne.s32.totalorder %s70, %s86
    %p88 = scmp.eq.s32.totalorder %s15, 0
    %p89 = por %p87, %p88
    %s90 = ssub.s32 %s9, %s16
    %p91 = scmp.eq.s32.totalorder %s90, 0
    %s93 = sadd.s32 %s92, 1
    %s94 = scalar_select %p91, %s92, %s93
    %p97 = pneg %p91
    %p98 = scmp.eq.s32.totalorder %s9, 1
    %p99 = por %p97, %p98
    %p100 = scmp.ne.s32.totalorder %s92, %s95
    %p101 = scmp.eq.s32.totalorder %s9, 0
    %p102 = por %p100, %p101
    %p103 = scmp.ne.s32.totalorder %s92, %s95
    %p104 = scmp.eq.s32.totalorder %s14, 1
    %p105 = por %p103, %p104
    %p106 = scmp.ne.s32.totalorder %s95, %s96
    %p107 = scmp.eq.s32.totalorder %s14, 0
    %p108 = por %p106, %p107
    %p109 = scmp.ne.s32.totalorder %s95, %s96
    %p110 = scmp.eq.s32.totalorder %s15, 1
    %p111 = por %p109, %p110
    %p113 = scmp.ne.s32.totalorder %s96, %s112
    %p114 = scmp.eq.s32.totalorder %s15, 0
    %p115 = por %p113, %p114
    %p116 = scmp.le.s32.totalorder 1, %s9
    %p117 = scmp.lt.s32.totalorder %s9, 3
    %p118 = pnand %p116, %p117
    %p119 = pneg %p118
    // Predicated region
    $region9: #{gcn_forward.2} parent=5 // pred_check
      _
    $region10: #{gcn_forward.2} parent=5 // pred_check_branch
      %121 = sbr.rel (%p118) target = $region12
    $region11: #{gcn_forward.2} parent=5 // pred_region
      %s122 = ssub.s32 %s9, 1
      // Predicated region
      $region13: #{gcn_forward.2} parent=11 // pred_check
        %p123 = pneg %p56
      $region14: #{gcn_forward.2} parent=11 // pred_check_branch
        %125 = sbr.rel (%p123) target = $region16
      $region15: #{gcn_forward.2} parent=11 // pred_region
        _
      $region16: #{gcn_forward.2} parent=11 // pred_fallthru
        _
    $region12: #{gcn_forward.2} parent=5 // pred_fallthru
      _
    %p126 = scmp.lt.s32.totalorder %s9, 2
    // Predicated region
    $region17: #{gcn_forward.2} parent=5 // pred_check
      %p127 = pneg %p126
    $region18: #{gcn_forward.2} parent=5 // pred_check_branch
      %129 = sbr.rel (%p127) target = $region20
    $region19: #{gcn_forward.2} parent=5 // pred_region
      // Predicated region
      $region21: #{gcn_forward.2} parent=19 // pred_check
        %p130 = pneg %p29
      $region22: #{gcn_forward.2} parent=19 // pred_check_branch
        %132 = sbr.rel (%p130) target = $region24
      $region23: #{gcn_forward.2} parent=19 // pred_region
        %s133 = smul.u32 16, %s9
        %p134 = scmp.lt.s32.totalorder %s133, 31
        %s135 = scalar_select %p134, %s133, 31
        %s136 = smul.addr %s135, 4
        %s137 = scalar_lea.vmem %s0, %s136
        %s138 = smul.u32 16, %s9
      $region24: #{gcn_forward.2} parent=19 // pred_fallthru
        _
      // Predicated region
      $region25: #{gcn_forward.2} parent=19 // pred_check
        %p139 = pneg %p76
      $region26: #{gcn_forward.2} parent=19 // pred_check_branch
        %141 = sbr.rel (%p139) target = $region28
      $region27: #{gcn_forward.2} parent=19 // pred_region
        %s142 = smul.u32 16, %s9
        %p143 = scmp.lt.s32.totalorder %s142, 31
        %s144 = scalar_select %p143, %s142, 31
        %s145 = smul.addr %s144, 8
        %s146 = scalar_lea.vmem %s2, %s145
        %s147 = smul.u32 16, %s9
      $region28: #{gcn_forward.2} parent=19 // pred_fallthru
        _
    $region20: #{gcn_forward.2} parent=5 // pred_fallthru
      _
    %p148 = scmp.le.s32.totalorder 1, %s9
    %p149 = scmp.lt.s32.totalorder %s9, 3
    %p150 = pnand %p148, %p149
    %p151 = pneg %p150
    // Predicated region
    $region29: #{gcn_forward.2} parent=5 // pred_check
      _
    $region30: #{gcn_forward.2} parent=5 // pred_check_branch
      %153 = sbr.rel (%p150) target = $region32
    $region31: #{gcn_forward.2} parent=5 // pred_region
      %s154 = ssub.s32 %s9, 1
      %s155 = smul.u32 16, %s14
      %p156 = scmp.lt.s32.totalorder %s155, 31
      %s157 = scalar_select %p156, %s155, 31
      %s158 = smul.addr %s157, 4
      %s159 = scalar_lea.vmem %s0, %s158
      %p160 = pneg %p35
      %p161 = pneg %p32
      %p162 = pneg %p56
      %p163 = pneg %p53
      %s164 = smul.u32 16, %s14
      %p165 = scmp.lt.s32.totalorder %s164, 31
      %s166 = scalar_select %p165, %s164, 31
      %s167 = smul.addr %s166, 8
      %s168 = scalar_lea.vmem %s2, %s167
      %p169 = pneg %p82
      %p170 = pneg %p79
      %p171 = pneg %p108
      %p172 = pneg %p105
      %s173 = smul.u32 16, %s14
      %p174 = scmp.lt.s32.totalorder %s173, 31
      %s175 = scalar_select %p174, %s173, 31
      %s176 = smul.addr %s175, 4
      %s177 = scalar_lea.vmem %s3, %s176
      %s178 = smul.u32 16, %s14
      %p179 = scmp.lt.s32.totalorder %s178, 31
      %s180 = scalar_select %p179, %s178, 31
      %s181 = smul.addr %s180, 4
      %s182 = scalar_lea.vmem %s0, %s181
      %s183 = smul.u32 16, %s14
      %s184 = smul.u32 16, %s14
      %p185 = scmp.lt.s32.totalorder %s184, 31
      %s186 = scalar_select %p185, %s184, 31
      %s187 = smul.addr %s186, 8
      %s188 = scalar_lea.vmem %s2, %s187
      %s189 = smul.u32 16, %s14
      %s190 = smul.u32 16, %s14
      %p191 = scmp.lt.s32.totalorder %s190, 31
      %s192 = scalar_select %p191, %s190, 31
      %s193 = smul.addr %s192, 4
      %s194 = scalar_lea.vmem %s3, %s193
      %s195 = smul.u32 16, %s14
      %v197 = vld [vmem:[%s182] sm:$0xf]
      %v198 = vld [vmem:[%s182 + $0x4] sm:$0xf]
      %v199 = vld [vmem:[%s182 + $0x8] sm:$0xf]
      %v200 = vld [vmem:[%s182 + $0xc] sm:$0xf]
      %v201 = vld [vmem:[%s182 + $0x10] sm:$0xf]
      %v202 = vld [vmem:[%s182 + $0x14] sm:$0xf]
      %v203 = vld [vmem:[%s182 + $0x18] sm:$0xf]
      %v204 = vld [vmem:[%s182 + $0x1c] sm:$0xf]
      %v205 = vld [vmem:[%s182 + $0x20] sm:$0xf]
      %v206 = vld [vmem:[%s182 + $0x24] sm:$0xf]
      %v207 = vld [vmem:[%s182 + $0x28] sm:$0xf]
      %v208 = vld [vmem:[%s182 + $0x2c] sm:$0xf]
      %v209 = vld [vmem:[%s182 + $0x30] sm:$0xf]
      %v210 = vld [vmem:[%s182 + $0x34] sm:$0xf]
      %v211 = vld [vmem:[%s182 + $0x38] sm:$0xf]
      %v212 = vld [vmem:[%s182 + $0x3c] sm:$0xf]
      %v213 = vld [vmem:[%s1] sm:$0xf]
      %v214 = vld [vmem:[%s1 + $0x4] sm:$0xf]
      %v215 = vld [vmem:[%s1 + $0x8] sm:$0xf]
      %v216 = vld [vmem:[%s1 + $0xc] sm:$0xf]
      %v217 = vld [vmem:[%s1 + $0x10] sm:$0xf]
      %v218 = vld [vmem:[%s1 + $0x14] sm:$0xf]
      %v219 = vld [vmem:[%s1 + $0x18] sm:$0xf]
      %v220 = vld [vmem:[%s1 + $0x1c] sm:$0xf]
      %v221 = vld [vmem:[%s1 + $0x20] sm:$0xf]
      %v222 = vld [vmem:[%s1 + $0x24] sm:$0xf]
      %v223 = vld [vmem:[%s1 + $0x28] sm:$0xf]
      %v224 = vld [vmem:[%s1 + $0x2c] sm:$0xf]
      %v225 = vld [vmem:[%s1 + $0x30] sm:$0xf]
      %v226 = vld [vmem:[%s1 + $0x34] sm:$0xf]
      %v227 = vld [vmem:[%s1 + $0x38] sm:$0xf]
      %v228 = vld [vmem:[%s1 + $0x3c] sm:$0xf]
      %v245 = vunpack.c.l.b16 %v197
      %v246 = vunpack.c.l.b16 %v198
      %v247 = vunpack.c.l.b16 %v199
      %v248 = vunpack.c.l.b16 %v200
      %v249 = vunpack.c.l.b16 %v201
      %v250 = vunpack.c.l.b16 %v202
      %v251 = vunpack.c.l.b16 %v203
      %v252 = vunpack.c.l.b16 %v204
      %v253 = vunpack.c.l.b16 %v205
      %v254 = vunpack.c.l.b16 %v206
      %v255 = vunpack.c.l.b16 %v207
      %v256 = vunpack.c.l.b16 %v208
      %v257 = vunpack.c.l.b16 %v209
      %v258 = vunpack.c.l.b16 %v210
      %v259 = vunpack.c.l.b16 %v211
      %v260 = vunpack.c.l.b16 %v212
      %v261 = vpack.c.b16 %v246, %v245
      %v262 = vpack.c.b16 %v248, %v247
      %v263 = vpack.c.b16 %v250, %v249
      %v264 = vpack.c.b16 %v252, %v251
      %v265 = vpack.c.b16 %v254, %v253
      %v266 = vpack.c.b16 %v256, %v255
      %v267 = vpack.c.b16 %v258, %v257
      %v268 = vpack.c.b16 %v260, %v259
      %v293 = vunpack.c.l.b16 %v213
      %v294 = vunpack.c.l.b16 %v214
      %v295 = vunpack.c.l.b16 %v215
      %v296 = vunpack.c.l.b16 %v216
      %v297 = vunpack.c.l.b16 %v217
      %v298 = vunpack.c.l.b16 %v218
      %v299 = vunpack.c.l.b16 %v219
      %v300 = vunpack.c.l.b16 %v220
      %v301 = vunpack.c.l.b16 %v221
      %v302 = vunpack.c.l.b16 %v222
      %v303 = vunpack.c.l.b16 %v223
      %v304 = vunpack.c.l.b16 %v224
      %v305 = vunpack.c.l.b16 %v225
      %v306 = vunpack.c.l.b16 %v226
      %v307 = vunpack.c.l.b16 %v227
      %v308 = vunpack.c.l.b16 %v228
      %v309 = vpack.c.b16 %v294, %v293
      %v310 = vpack.c.b16 %v296, %v295
      %v311 = vpack.c.b16 %v298, %v297
      %v312 = vpack.c.b16 %v300, %v299
      %v313 = vpack.c.b16 %v302, %v301
      %v314 = vpack.c.b16 %v304, %v303
      %v315 = vpack.c.b16 %v306, %v305
      %v316 = vpack.c.b16 %v308, %v307
      %325 = vmatprep.subr.bf16.mxu0 0
      %326 = vmatpush1.bf16.msra.mxu0 %v309
      %327 = vmatprep.subr.bf16.mxu0 0
      %328 = vmatpush1.bf16.msra.mxu0 %v310
      %329 = vmatprep.subr.bf16.mxu0 0
      %330 = vmatpush1.bf16.msra.mxu0 %v311
      %331 = vmatprep.subr.bf16.mxu0 0
      %332 = vmatpush1.bf16.msra.mxu0 %v312
      %333 = vmatprep.subr.bf16.mxu0 0
      %334 = vmatpush1.bf16.msra.mxu0 %v313
      %335 = vmatprep.subr.bf16.mxu0 0
      %336 = vmatpush1.bf16.msra.mxu0 %v314
      %337 = vmatprep.subr.bf16.mxu0 0
      %338 = vmatpush1.bf16.msra.mxu0 %v315
      %339 = vmatprep.subr.bf16.mxu0 0
      %340 = vmatpush1.bf16.msra.mxu0 %v316
      %341 = vmatprep.subr.bf16.mxu0 0
      %342 = vmatpush1.bf16.msra.mxu0 0
      %343 = vmatprep.subr.bf16.mxu0 0
      %344 = vmatpush1.bf16.msra.mxu0 0
      %345 = vmatprep.subr.bf16.mxu0 0
      %346 = vmatpush1.bf16.msra.mxu0 0
      %347 = vmatprep.subr.bf16.mxu0 0
      %348 = vmatpush1.bf16.msra.mxu0 0
      %349 = vmatprep.subr.bf16.mxu0 0
      %350 = vmatpush1.bf16.msra.mxu0 0
      %351 = vmatprep.subr.bf16.mxu0 0
      %352 = vmatpush1.bf16.msra.mxu0 0
      %353 = vmatprep.subr.bf16.mxu0 0
      %354 = vmatpush1.bf16.msra.mxu0 0
      %355 = vmatprep.subr.bf16.mxu0 0
      %356 = vmatpush1.bf16.msra.mxu0 0
      %357 = vmatprep.mubr.bf16.mxu0 0
      %358 = vmatmul.mubr.bf16.gmra.mrb[0].mxu0 %v261
      %v359 = vpop.f32.mrb[0].mxu0
      %v360 = vadd.f32 0.0, %v359
      %v361 = vpop.f32.mrb[0].mxu0
      %v362 = vpop.f32.mrb[0].mxu0
      %v363 = vadd.f32 0.0, %v362
      %v364 = vpop.f32.mrb[0].mxu0
      %365 = vmatprep.mubr.bf16.mxu0 0
      %366 = vmatmul.mubr.bf16.gmra.mrb[0].mxu0 %v262
      %v367 = vpop.f32.mrb[0].mxu0
      %v368 = vadd.f32 0.0, %v367
      %v369 = vpop.f32.mrb[0].mxu0
      %v370 = vpop.f32.mrb[0].mxu0
      %v371 = vadd.f32 0.0, %v370
      %v372 = vpop.f32.mrb[0].mxu0
      %373 = vmatprep.mubr.bf16.mxu0 0
      %374 = vmatmul.mubr.bf16.gmra.mrb[0].mxu0 %v263
      %v375 = vpop.f32.mrb[0].mxu0
      %v376 = vadd.f32 0.0, %v375
      %v377 = vpop.f32.mrb[0].mxu0
      %v378 = vpop.f32.mrb[0].mxu0
      %v379 = vadd.f32 0.0, %v378
      %v380 = vpop.f32.mrb[0].mxu0
      %381 = vmatprep.mubr.bf16.mxu0 0
      %382 = vmatmul.mubr.bf16.gmra.mrb[0].mxu0 %v264
      %v383 = vpop.f32.mrb[0].mxu0
      %v384 = vadd.f32 0.0, %v383
      %v385 = vpop.f32.mrb[0].mxu0
      %v386 = vpop.f32.mrb[0].mxu0
      %v387 = vadd.f32 0.0, %v386
      %v388 = vpop.f32.mrb[0].mxu0
      %389 = vmatprep.mubr.bf16.mxu0 0
      %390 = vmatmul.mubr.bf16.gmra.mrb[0].mxu0 %v265
      %v391 = vpop.f32.mrb[0].mxu0
      %v392 = vadd.f32 0.0, %v391
      %v393 = vpop.f32.mrb[0].mxu0
      %v394 = vpop.f32.mrb[0].mxu0
      %v395 = vadd.f32 0.0, %v394
      %v396 = vpop.f32.mrb[0].mxu0
      %397 = vmatprep.mubr.bf16.mxu0 0
      %398 = vmatmul.mubr.bf16.gmra.mrb[0].mxu0 %v266
      %v399 = vpop.f32.mrb[0].mxu0
      %v400 = vadd.f32 0.0, %v399
      %v401 = vpop.f32.mrb[0].mxu0
      %v402 = vpop.f32.mrb[0].mxu0
      %v403 = vadd.f32 0.0, %v402
      %v404 = vpop.f32.mrb[0].mxu0
      %405 = vmatprep.mubr.bf16.mxu0 0
      %406 = vmatmul.mubr.bf16.gmra.mrb[0].mxu0 %v267
      %v407 = vpop.f32.mrb[0].mxu0
      %v408 = vadd.f32 0.0, %v407
      %v409 = vpop.f32.mrb[0].mxu0
      %v410 = vpop.f32.mrb[0].mxu0
      %v411 = vadd.f32 0.0, %v410
      %v412 = vpop.f32.mrb[0].mxu0
      %413 = vmatprep.mubr.bf16.mxu0 0
      %414 = vmatmul.mubr.bf16.gmra.mrb[0].mxu0 %v268
      %v415 = vpop.f32.mrb[0].mxu0
      %v416 = vadd.f32 0.0, %v415
      %v417 = vpop.f32.mrb[0].mxu0
      %v418 = vpop.f32.mrb[0].mxu0
      %v419 = vadd.f32 0.0, %v418
      %v420 = vpop.f32.mrb[0].mxu0
      %421 = vdwg.mxu0
      %v422 = vld [vmem:[%s188] sm:$0xff]
      %v423 = vld [vmem:[%s188 + $0x8] sm:$0xff]
      %v424 = vld [vmem:[%s188 + $0x10] sm:$0xff]
      %v425 = vld [vmem:[%s188 + $0x18] sm:$0xff]
      %v426 = vld [vmem:[%s188 + $0x20] sm:$0xff]
      %v427 = vld [vmem:[%s188 + $0x28] sm:$0xff]
      %v428 = vld [vmem:[%s188 + $0x30] sm:$0xff]
      %v429 = vld [vmem:[%s188 + $0x38] sm:$0xff]
      %v430 = vld [vmem:[%s188 + $0x40] sm:$0xff]
      %v431 = vld [vmem:[%s188 + $0x48] sm:$0xff]
      %v432 = vld [vmem:[%s188 + $0x50] sm:$0xff]
      %v433 = vld [vmem:[%s188 + $0x58] sm:$0xff]
      %v434 = vld [vmem:[%s188 + $0x60] sm:$0xff]
      %v435 = vld [vmem:[%s188 + $0x68] sm:$0xff]
      %v436 = vld [vmem:[%s188 + $0x70] sm:$0xff]
      %v437 = vld [vmem:[%s188 + $0x78] sm:$0xff]
      %439 = vset.pattern.permute.xlu0 0
      %440 = vperm.xlu0 %439, %v422
      %v441 = vpop.permute.xlu0 %440
      %444 = vset.pattern.permute.xlu0 0
      %445 = vperm.xlu0 %444, %v423
      %v446 = vpop.permute.xlu0 %445
      %449 = vset.pattern.permute.xlu0 0
      %450 = vperm.xlu0 %449, %v424
      %v451 = vpop.permute.xlu0 %450
      %454 = vset.pattern.permute.xlu0 0
      %455 = vperm.xlu0 %454, %v425
      %v456 = vpop.permute.xlu0 %455
      %459 = vset.pattern.permute.xlu0 0
      %460 = vperm.xlu0 %459, %v426
      %v461 = vpop.permute.xlu0 %460
      %464 = vset.pattern.permute.xlu0 0
      %465 = vperm.xlu0 %464, %v427
      %v466 = vpop.permute.xlu0 %465
      %469 = vset.pattern.permute.xlu0 0
      %470 = vperm.xlu0 %469, %v428
      %v471 = vpop.permute.xlu0 %470
      %474 = vset.pattern.permute.xlu0 0
      %475 = vperm.xlu0 %474, %v429
      %v476 = vpop.permute.xlu0 %475
      %479 = vset.pattern.permute.xlu0 0
      %480 = vperm.xlu0 %479, %v430
      %v481 = vpop.permute.xlu0 %480
      %484 = vset.pattern.permute.xlu0 0
      %485 = vperm.xlu0 %484, %v431
      %v486 = vpop.permute.xlu0 %485
      %489 = vset.pattern.permute.xlu0 0
      %490 = vperm.xlu0 %489, %v432
      %v491 = vpop.permute.xlu0 %490
      %494 = vset.pattern.permute.xlu0 0
      %495 = vperm.xlu0 %494, %v433
      %v496 = vpop.permute.xlu0 %495
      %499 = vset.pattern.permute.xlu0 0
      %500 = vperm.xlu0 %499, %v434
      %v501 = vpop.permute.xlu0 %500
      %504 = vset.pattern.permute.xlu0 0
      %505 = vperm.xlu0 %504, %v435
      %v506 = vpop.permute.xlu0 %505
      %509 = vset.pattern.permute.xlu0 0
      %510 = vperm.xlu0 %509, %v436
      %v511 = vpop.permute.xlu0 %510
      %514 = vset.pattern.permute.xlu0 0
      %515 = vperm.xlu0 %514, %v437
      %v516 = vpop.permute.xlu0 %515
      %v518 = vmul.f32 %v441, %v360
      %v519 = vmul.f32 %v446, %v363
      %v520 = vmul.f32 %v451, %v368
      %v521 = vmul.f32 %v456, %v371
      %v522 = vmul.f32 %v461, %v376
      %v523 = vmul.f32 %v466, %v379
      %v524 = vmul.f32 %v471, %v384
      %v525 = vmul.f32 %v476, %v387
      %v526 = vmul.f32 %v481, %v392
      %v527 = vmul.f32 %v486, %v395
      %v528 = vmul.f32 %v491, %v400
      %v529 = vmul.f32 %v496, %v403
      %v530 = vmul.f32 %v501, %v408
      %v531 = vmul.f32 %v506, %v411
      %v532 = vmul.f32 %v511, %v416
      %v533 = vmul.f32 %v516, %v419
      %v534 = vpack.c.bf16 %v519, %v518
      %v535 = vpack.c.bf16 %v521, %v520
      %v536 = vpack.c.bf16 %v523, %v522
      %v537 = vpack.c.bf16 %v525, %v524
      %v538 = vpack.c.bf16 %v527, %v526
      %v539 = vpack.c.bf16 %v529, %v528
      %v540 = vpack.c.bf16 %v531, %v530
      %v541 = vpack.c.bf16 %v533, %v532
      %v550 = vunpack.c.l.b16 %v534
      %v551 = vunpack.c.h.b16 %v534
      %v552 = vunpack.c.l.b16 %v535
      %v553 = vunpack.c.h.b16 %v535
      %v554 = vunpack.c.l.b16 %v536
      %v555 = vunpack.c.h.b16 %v536
      %v556 = vunpack.c.l.b16 %v537
      %v557 = vunpack.c.h.b16 %v537
      %v558 = vunpack.c.l.b16 %v538
      %v559 = vunpack.c.h.b16 %v538
      %v560 = vunpack.c.l.b16 %v539
      %v561 = vunpack.c.h.b16 %v539
      %v562 = vunpack.c.l.b16 %v540
      %v563 = vunpack.c.h.b16 %v540
      %v564 = vunpack.c.l.b16 %v541
      %v565 = vunpack.c.h.b16 %v541
      %v566 = vpack.c.b16 %v550, %v550
      %v567 = vpack.c.b16 %v551, %v551
      %v568 = vpack.c.b16 %v552, %v552
      %v569 = vpack.c.b16 %v553, %v553
      %v570 = vpack.c.b16 %v554, %v554
      %v571 = vpack.c.b16 %v555, %v555
      %v572 = vpack.c.b16 %v556, %v556
      %v573 = vpack.c.b16 %v557, %v557
      %v574 = vpack.c.b16 %v558, %v558
      %v575 = vpack.c.b16 %v559, %v559
      %v576 = vpack.c.b16 %v560, %v560
      %v577 = vpack.c.b16 %v561, %v561
      %v578 = vpack.c.b16 %v562, %v562
      %v579 = vpack.c.b16 %v563, %v563
      %v580 = vpack.c.b16 %v564, %v564
      %v581 = vpack.c.b16 %v565, %v565
      %598 = vst [vmem:[%s194] sm:$0xf] %v566
      %599 = vst [vmem:[%s194 + $0x4] sm:$0xf] %v567
      %600 = vst [vmem:[%s194 + $0x8] sm:$0xf] %v568
      %601 = vst [vmem:[%s194 + $0xc] sm:$0xf] %v569
      %602 = vst [vmem:[%s194 + $0x10] sm:$0xf] %v570
      %603 = vst [vmem:[%s194 + $0x14] sm:$0xf] %v571
      %604 = vst [vmem:[%s194 + $0x18] sm:$0xf] %v572
      %605 = vst [vmem:[%s194 + $0x1c] sm:$0xf] %v573
      %606 = vst [vmem:[%s194 + $0x20] sm:$0xf] %v574
      %607 = vst [vmem:[%s194 + $0x24] sm:$0xf] %v575
      %608 = vst [vmem:[%s194 + $0x28] sm:$0xf] %v576
      %609 = vst [vmem:[%s194 + $0x2c] sm:$0xf] %v577
      %610 = vst [vmem:[%s194 + $0x30] sm:$0xf] %v578
      %611 = vst [vmem:[%s194 + $0x34] sm:$0xf] %v579
      %612 = vst [vmem:[%s194 + $0x38] sm:$0xf] %v580
      %613 = vst [vmem:[%s194 + $0x3c] sm:$0xf] %v581
      %s614 = smul.u32 16, %s14
      %p615 = scmp.lt.s32.totalorder %s614, 31
      %s616 = scalar_select %p615, %s614, 31
      %s617 = smul.addr %s616, 4
      %s618 = scalar_lea.vmem %s3, %s617
      // Predicated region
      $region33: #{gcn_forward.2} parent=31 // pred_check
        %p619 = pneg %p105
      $region34: #{gcn_forward.2} parent=31 // pred_check_branch
        %621 = sbr.rel (%p619) target = $region36
      $region35: #{gcn_forward.2} parent=31 // pred_region
        %s622 = smul.u32 16, %s14
      $region36: #{gcn_forward.2} parent=31 // pred_fallthru
        _
    $region32: #{gcn_forward.2} parent=5 // pred_fallthru
      _
    %p623 = scmp.le.s32.totalorder 2, %s9
    // Predicated region
    $region37: #{gcn_forward.2} parent=5 // pred_check
      %p624 = pneg %p623
    $region38: #{gcn_forward.2} parent=5 // pred_check_branch
      %626 = sbr.rel (%p624) target = $region40
    $region39: #{gcn_forward.2} parent=5 // pred_region
      %s627 = ssub.s32 %s9, 2
      // Predicated region
      $region41: #{gcn_forward.2} parent=39 // pred_check
        %p628 = pneg %p111
      $region42: #{gcn_forward.2} parent=39 // pred_check_branch
        %630 = sbr.rel (%p628) target = $region44
      $region43: #{gcn_forward.2} parent=39 // pred_region
        %s631 = smul.u32 16, %s15
        %p632 = scmp.lt.s32.totalorder %s631, 31
        %s633 = scalar_select %p632, %s631, 31
        %s634 = smul.addr %s633, 4
        %s635 = scalar_lea.vmem %s3, %s634
      $region44: #{gcn_forward.2} parent=39 // pred_fallthru
        _
    $region40: #{gcn_forward.2} parent=5 // pred_fallthru
      _
  $region6: #{gcn_forward.2} parent=0 // loop_footer
    %s13 = sadd.s32 1, %s9
  $region7: #{gcn_forward.2} parent=0 // loop_footer_branch
    %8 = sbr.rel target = $region3
  $region8: #{gcn_forward.2} parent=0 // loop_exit
    _

// kernel: gcn_forward.3
$region0: #{gcn_forward.3}
  #allocation0 [shape = 'u32[]', space=smem, size = 0x4, offset = 0x4, fixed_abs, tag = 'smem constant byte address 0x4 - core index']
  #allocation1 [shape = 'u32[144,128]{1,0:T(1,128)}', space=vmem, size = 0x12000, scoped, tag = 'internal scratch']
  #allocation2 [shape = 'bf16[256,128]{1,0:T(16,128)(2,1)}', space=vmem, size = 0x10000, scoped, tag = 'scratch operand']
  #allocation3 [shape = 'f32[128,128]{1,0:T(8,128)}', space=vmem, size = 0x10000, scoped, tag = 'scratch operand']
  %s0 = inlined_call_operand.vmem [shape: f32[256,1], index: 0, kind: input, shape index: {}]
  %s1 = inlined_call_operand.vmem [shape: s8[256,256], index: 1, kind: input, shape index: {}]
  %s2 = inlined_call_operand.vmem [shape: bf16[256,128], index: 2, kind: input, shape index: {}]
  %s3 = inlined_call_operand.vmem [shape: f32[1,128], index: 3, kind: input, shape index: {}]
  %s4 = inlined_call_operand.vmem [shape: bf16[128,128], index: 4, kind: input, shape index: {}]
  %s5 = inlined_call_operand.vmem [shape: f32[1,128], index: 5, kind: input, shape index: {}]
  %s6 = inlined_call_operand.vmem [shape: f32[256,128], index: 6, kind: output, shape index: {}]
  %s7 = sld [smem:[#allocation0]]
  $region79: #{gcn_forward.3} parent=0
    _
  %s9 = ssub.s32 1, %s7
  %s10 = scalar_select 0, %s9, %s7
  loop: start=0, step=1, limit=6
  $region2: #{gcn_forward.3} parent=0 // loop_pre_header
    _
  $region3: #{gcn_forward.3} parent=0 // loop_header
    %s12 = sphi 0, %s16
    %p13 = scmp.ge.s32.totalorder %s12, 6
    %s19 = sphi 0, %s31
    %s20 = sphi 0, %s27
    %s21 = sphi 0, %s19
    %s22 = sphi 0, %s20
    %s23 = sphi 0, %s21
    %s24 = sphi 0, %s22
    %s34 = sphi 0, %s36
    %s37 = sphi 0, %s34
    %s38 = sphi 0, %s37
    %s54 = sphi 0, %s38
    %s58 = sphi 0, %s58
    %s60 = sphi 0, %s58
    %s61 = sphi 0, %s60
    %s75 = sphi 0, %s61
    %s79 = sphi 0, %s79
    %s81 = sphi 0, %s79
    %s82 = sphi 0, %s81
    %s96 = sphi 0, %s82
    %s100 = sphi 0, %s100
    %s102 = sphi 0, %s100
    %s103 = sphi 0, %s102
    %s117 = sphi 0, %s103
    %s121 = sphi 0, %s121
    %s123 = sphi 0, %s121
    %s124 = sphi 0, %s123
    %s138 = sphi 0, %s124
    %s142 = sphi 0, %s142
    %s144 = sphi 0, %s142
    %s145 = sphi 0, %s144
    %s159 = sphi 0, %s145
    %s167 = sphi 0, %s169
    %s170 = sphi 0, %s167
    %s171 = sphi 0, %s170
    %s187 = sphi 0, %s171
  $region4: #{gcn_forward.3} parent=0 // loop_header_branch
    %15 = sbr.rel (%p13) target = $region8
  $region5: #{gcn_forward.3} parent=0 // loop_body
    %s17 = ssub.s32 %s12, 1
    %s18 = ssub.s32 %s12, 2
    %s25 = sadd.s32 1, %s20
    %p26 = scmp.ge.s32.totalorder %s25, 2
    %s27 = scalar_select %p26, 0, %s25
    %s28 = sadd.s32 1, %s19
    %s29 = scalar_select %p26, %s28, %s19
    %p30 = scmp.ge.s32.totalorder %s29, 2
    %s31 = scalar_select %p30, 0, %s29
    %s32 = ssub.s32 %s20, %s27
    %p33 = scmp.eq.s32.totalorder %s32, 0
    %s35 = sadd.s32 %s34, 1
    %s36 = scalar_select %p33, %s34, %s35
    %p39 = pneg %p33
    %p40 = scmp.eq.s32.totalorder %s12, 3
    %p41 = por %p39, %p40
    %p42 = scmp.ne.s32.totalorder %s34, %s37
    %p43 = scmp.eq.s32.totalorder %s12, 0
    %p44 = por %p42, %p43
    %p45 = scmp.ne.s32.totalorder %s34, %s37
    %p46 = scmp.eq.s32.totalorder %s17, 3
    %p47 = por %p45, %p46
    %p48 = scmp.ne.s32.totalorder %s37, %s38
    %p49 = scmp.eq.s32.totalorder %s17, 0
    %p50 = por %p48, %p49
    %p51 = scmp.ne.s32.totalorder %s37, %s38
    %p52 = scmp.eq.s32.totalorder %s18, 3
    %p53 = por %p51, %p52
    %p55 = scmp.ne.s32.totalorder %s38, %s54
    %p56 = scmp.eq.s32.totalorder %s18, 0
    %p57 = por %p55, %p56
    %s59 = sadd.s32 %s58, 1
    %p62 = scmp.eq.s32.totalorder %s12, 3
    %p63 = scmp.ne.s32.totalorder %s58, %s60
    %p64 = scmp.eq.s32.totalorder %s12, 0
    %p65 = por %p63, %p64
    %p66 = scmp.ne.s32.totalorder %s58, %s60
    %p67 = scmp.eq.s32.totalorder %s17, 3
    %p68 = por %p66, %p67
    %p69 = scmp.ne.s32.totalorder %s60, %s61
    %p70 = scmp.eq.s32.totalorder %s17, 0
    %p71 = por %p69, %p70
    %p72 = scmp.ne.s32.totalorder %s60, %s61
    %p73 = scmp.eq.s32.totalorder %s18, 3
    %p74 = por %p72, %p73
    %p76 = scmp.ne.s32.totalorder %s61, %s75
    %p77 = scmp.eq.s32.totalorder %s18, 0
    %p78 = por %p76, %p77
    %s80 = sadd.s32 %s79, 1
    %p83 = scmp.eq.s32.totalorder %s12, 3
    %p84 = scmp.ne.s32.totalorder %s79, %s81
    %p85 = scmp.eq.s32.totalorder %s12, 0
    %p86 = por %p84, %p85
    %p87 = scmp.ne.s32.totalorder %s79, %s81
    %p88 = scmp.eq.s32.totalorder %s17, 3
    %p89 = por %p87, %p88
    %p90 = scmp.ne.s32.totalorder %s81, %s82
    %p91 = scmp.eq.s32.totalorder %s17, 0
    %p92 = por %p90, %p91
    %p93 = scmp.ne.s32.totalorder %s81, %s82
    %p94 = scmp.eq.s32.totalorder %s18, 3
    %p95 = por %p93, %p94
    %p97 = scmp.ne.s32.totalorder %s82, %s96
    %p98 = scmp.eq.s32.totalorder %s18, 0
    %p99 = por %p97, %p98
    %s101 = sadd.s32 %s100, 1
    %p104 = scmp.eq.s32.totalorder %s12, 3
    %p105 = scmp.ne.s32.totalorder %s100, %s102
    %p106 = scmp.eq.s32.totalorder %s12, 0
    %p107 = por %p105, %p106
    %p108 = scmp.ne.s32.totalorder %s100, %s102
    %p109 = scmp.eq.s32.totalorder %s17, 3
    %p110 = por %p108, %p109
    %p111 = scmp.ne.s32.totalorder %s102, %s103
    %p112 = scmp.eq.s32.totalorder %s17, 0
    %p113 = por %p111, %p112
    %p114 = scmp.ne.s32.totalorder %s102, %s103
    %p115 = scmp.eq.s32.totalorder %s18, 3
    %p116 = por %p114, %p115
    %p118 = scmp.ne.s32.totalorder %s103, %s117
    %p119 = scmp.eq.s32.totalorder %s18, 0
    %p120 = por %p118, %p119
    %s122 = sadd.s32 %s121, 1
    %p125 = scmp.eq.s32.totalorder %s12, 3
    %p126 = scmp.ne.s32.totalorder %s121, %s123
    %p127 = scmp.eq.s32.totalorder %s12, 0
    %p128 = por %p126, %p127
    %p129 = scmp.ne.s32.totalorder %s121, %s123
    %p130 = scmp.eq.s32.totalorder %s17, 3
    %p131 = por %p129, %p130
    %p132 = scmp.ne.s32.totalorder %s123, %s124
    %p133 = scmp.eq.s32.totalorder %s17, 0
    %p134 = por %p132, %p133
    %p135 = scmp.ne.s32.totalorder %s123, %s124
    %p136 = scmp.eq.s32.totalorder %s18, 3
    %p137 = por %p135, %p136
    %p139 = scmp.ne.s32.totalorder %s124, %s138
    %p140 = scmp.eq.s32.totalorder %s18, 0
    %p141 = por %p139, %p140
    %s143 = sadd.s32 %s142, 1
    %p146 = scmp.eq.s32.totalorder %s12, 3
    %p147 = scmp.ne.s32.totalorder %s142, %s144
    %p148 = scmp.eq.s32.totalorder %s12, 0
    %p149 = por %p147, %p148
    %p150 = scmp.ne.s32.totalorder %s142, %s144
    %p151 = scmp.eq.s32.totalorder %s17, 3
    %p152 = por %p150, %p151
    %p153 = scmp.ne.s32.totalorder %s144, %s145
    %p154 = scmp.eq.s32.totalorder %s17, 0
    %p155 = por %p153, %p154
    %p156 = scmp.ne.s32.totalorder %s144, %s145
    %p157 = scmp.eq.s32.totalorder %s18, 3
    %p158 = por %p156, %p157
    %p160 = scmp.ne.s32.totalorder %s145, %s159
    %p161 = scmp.eq.s32.totalorder %s18, 0
    %p162 = por %p160, %p161
    %s163 = smul.u32 %s20, %s19
    %s164 = smul.u32 %s27, %s31
    %s165 = ssub.s32 %s163, %s164
    %p166 = scmp.eq.s32.totalorder %s165, 0
    %s168 = sadd.s32 %s167, 1
    %s169 = scalar_select %p166, %s167, %s168
    %p172 = pneg %p166
    %p173 = scmp.eq.s32.totalorder %s12, 3
    %p174 = por %p172, %p173
    %p175 = scmp.ne.s32.totalorder %s167, %s170
    %p176 = scmp.eq.s32.totalorder %s12, 0
    %p177 = por %p175, %p176
    %p178 = scmp.ne.s32.totalorder %s167, %s170
    %p179 = scmp.eq.s32.totalorder %s17, 3
    %p180 = por %p178, %p179
    %p181 = scmp.ne.s32.totalorder %s170, %s171
    %p182 = scmp.eq.s32.totalorder %s17, 0
    %p183 = por %p181, %p182
    %p184 = scmp.ne.s32.totalorder %s170, %s171
    %p185 = scmp.eq.s32.totalorder %s18, 3
    %p186 = por %p184, %p185
    %p188 = scmp.ne.s32.totalorder %s171, %s187
    %p189 = scmp.eq.s32.totalorder %s18, 0
    %p190 = por %p188, %p189
    %p191 = scmp.le.s32.totalorder 1, %s12
    %p192 = scmp.lt.s32.totalorder %s12, 5
    %p193 = pnand %p191, %p192
    %p194 = pneg %p193
    // Predicated region
    $region9: #{gcn_forward.3} parent=5 // pred_check
      _
    $region10: #{gcn_forward.3} parent=5 // pred_check_branch
      %196 = sbr.rel (%p193) target = $region12
    $region11: #{gcn_forward.3} parent=5 // pred_region
      %s197 = ssub.s32 %s12, 1
      // Predicated region
      $region13: #{gcn_forward.3} parent=11 // pred_check
        %p198 = pneg %p71
      $region14: #{gcn_forward.3} parent=11 // pred_check_branch
        %200 = sbr.rel (%p198) target = $region16
      $region15: #{gcn_forward.3} parent=11 // pred_region
        _
      $region16: #{gcn_forward.3} parent=11 // pred_fallthru
        _
      // Predicated region
      $region17: #{gcn_forward.3} parent=11 // pred_check
        %p201 = pneg %p92
      $region18: #{gcn_forward.3} parent=11 // pred_check_branch
        %203 = sbr.rel (%p201) target = $region20
      $region19: #{gcn_forward.3} parent=11 // pred_region
        _
      $region20: #{gcn_forward.3} parent=11 // pred_fallthru
        _
      // Predicated region
      $region21: #{gcn_forward.3} parent=11 // pred_check
        %p204 = pneg %p113
      $region22: #{gcn_forward.3} parent=11 // pred_check_branch
        %206 = sbr.rel (%p204) target = $region24
      $region23: #{gcn_forward.3} parent=11 // pred_region
        _
      $region24: #{gcn_forward.3} parent=11 // pred_fallthru
        _
      // Predicated region
      $region25: #{gcn_forward.3} parent=11 // pred_check
        %p207 = pneg %p134
      $region26: #{gcn_forward.3} parent=11 // pred_check_branch
        %209 = sbr.rel (%p207) target = $region28
      $region27: #{gcn_forward.3} parent=11 // pred_region
        _
      $region28: #{gcn_forward.3} parent=11 // pred_fallthru
        _
      // Predicated region
      $region29: #{gcn_forward.3} parent=11 // pred_check
        %p210 = pneg %p155
      $region30: #{gcn_forward.3} parent=11 // pred_check_branch
        %212 = sbr.rel (%p210) target = $region32
      $region31: #{gcn_forward.3} parent=11 // pred_region
        _
      $region32: #{gcn_forward.3} parent=11 // pred_fallthru
        _
    $region12: #{gcn_forward.3} parent=5 // pred_fallthru
      _
    %p213 = scmp.lt.s32.totalorder %s12, 4
    // Predicated region
    $region33: #{gcn_forward.3} parent=5 // pred_check
      %p214 = pneg %p213
    $region34: #{gcn_forward.3} parent=5 // pred_check_branch
      %216 = sbr.rel (%p214) target = $region36
    $region35: #{gcn_forward.3} parent=5 // pred_region
      // Predicated region
      $region37: #{gcn_forward.3} parent=35 // pred_check
        %p217 = pneg %p44
      $region38: #{gcn_forward.3} parent=35 // pred_check_branch
        %219 = sbr.rel (%p217) target = $region40
      $region39: #{gcn_forward.3} parent=35 // pred_region
        %s220 = smul.u32 16, %s20
        %p221 = scmp.lt.s32.totalorder %s220, 31
        %s222 = scalar_select %p221, %s220, 31
        %s223 = smul.addr %s222, 8
        %s224 = scalar_lea.vmem %s0, %s223
        %s225 = smul.u32 16, %s20
      $region40: #{gcn_forward.3} parent=35 // pred_fallthru
        _
    $region36: #{gcn_forward.3} parent=5 // pred_fallthru
      _
    %p226 = scmp.le.s32.totalorder 1, %s12
    %p227 = scmp.lt.s32.totalorder %s12, 5
    %p228 = pnand %p226, %p227
    %p229 = pneg %p228
    // Predicated region
    $region41: #{gcn_forward.3} parent=5 // pred_check
      _
    $region42: #{gcn_forward.3} parent=5 // pred_check_branch
      %231 = sbr.rel (%p228) target = $region44
    $region43: #{gcn_forward.3} parent=5 // pred_region
      %s232 = ssub.s32 %s12, 1
      %s233 = smul.u32 16, %s22
      %p234 = scmp.lt.s32.totalorder %s233, 31
      %s235 = scalar_select %p234, %s233, 31
      %s236 = smul.addr %s235, 8
      %s237 = scalar_lea.vmem %s0, %s236
      %p238 = pneg %p50
      %p239 = pneg %p47
      %p240 = pneg %p71
      %p241 = pneg %p68
      %p242 = pneg %p92
      %p243 = pneg %p89
      %p244 = pneg %p113
      %p245 = pneg %p110
      %p246 = pneg %p134
      %p247 = pneg %p131
      %p248 = pneg %p155
      %p249 = pneg %p152
      %p250 = pneg %p183
      %p251 = pneg %p180
      %s252 = smul.u32 %s22, %s21
      %s253 = smul.u32 16, %s252
      %p254 = scmp.lt.s32.totalorder %s253, 31
      %s255 = scalar_select %p254, %s253, 31
      %s256 = smul.addr %s255, 8
      %s257 = scalar_lea.vmem %s6, %s256
      %s258 = smul.u32 16, %s22
      %p259 = scmp.lt.s32.totalorder %s258, 31
      %s260 = scalar_select %p259, %s258, 31
      %s261 = smul.addr %s260, 8
      %s262 = scalar_lea.vmem %s0, %s261
      %s263 = smul.u32 16, %s22
      %s264 = smul.u32 %s22, %s21
      %s265 = smul.u32 16, %s264
      %p266 = scmp.lt.s32.totalorder %s265, 31
      %s267 = scalar_select %p266, %s265, 31
      %s268 = smul.addr %s267, 8
      %s269 = scalar_lea.vmem %s6, %s268
      %s270 = smul.u32 %s22, %s21
      %s271 = smul.u32 16, %s270
      %s273 = smul.u32 %s22, 128
      %v274 = vld [vmem:[%s262] sm:$0xff]
      %v275 = vld [vmem:[%s262 + $0x8] sm:$0xff]
      %v276 = vld [vmem:[%s262 + $0x10] sm:$0xff]
      %v277 = vld [vmem:[%s262 + $0x18] sm:$0xff]
      %v278 = vld [vmem:[%s262 + $0x20] sm:$0xff]
      %v279 = vld [vmem:[%s262 + $0x28] sm:$0xff]
      %v280 = vld [vmem:[%s262 + $0x30] sm:$0xff]
      %v281 = vld [vmem:[%s262 + $0x38] sm:$0xff]
      %v282 = vld [vmem:[%s262 + $0x40] sm:$0xff]
      %v283 = vld [vmem:[%s262 + $0x48] sm:$0xff]
      %v284 = vld [vmem:[%s262 + $0x50] sm:$0xff]
      %v285 = vld [vmem:[%s262 + $0x58] sm:$0xff]
      %v286 = vld [vmem:[%s262 + $0x60] sm:$0xff]
      %v287 = vld [vmem:[%s262 + $0x68] sm:$0xff]
      %v288 = vld [vmem:[%s262 + $0x70] sm:$0xff]
      %v289 = vld [vmem:[%s262 + $0x78] sm:$0xff]
      %p290 = scmp.eq.s32.totalorder %s21, 0
      // Predicated region
      $region45: #{gcn_forward.3} parent=43 // pred_check
        %p291 = pneg %p290
      $region46: #{gcn_forward.3} parent=43 // pred_check_branch
        %293 = sbr.rel (%p291) target = $region48
      $region47: #{gcn_forward.3} parent=43 // pred_region
        %294 = vst [vmem:[#allocation3] sm:$0xff] 0.0
        %295 = vst [vmem:[#allocation3 + $0x8] sm:$0xff] 0.0
        %296 = vst [vmem:[#allocation3 + $0x10] sm:$0xff] 0.0
        %297 = vst [vmem:[#allocation3 + $0x18] sm:$0xff] 0.0
        %298 = vst [vmem:[#allocation3 + $0x20] sm:$0xff] 0.0
        %299 = vst [vmem:[#allocation3 + $0x28] sm:$0xff] 0.0
        %300 = vst [vmem:[#allocation3 + $0x30] sm:$0xff] 0.0
        %301 = vst [vmem:[#allocation3 + $0x38] sm:$0xff] 0.0
        %302 = vst [vmem:[#allocation3 + $0x40] sm:$0xff] 0.0
        %303 = vst [vmem:[#allocation3 + $0x48] sm:$0xff] 0.0
        %304 = vst [vmem:[#allocation3 + $0x50] sm:$0xff] 0.0
        %305 = vst [vmem:[#allocation3 + $0x58] sm:$0xff] 0.0
        %306 = vst [vmem:[#allocation3 + $0x60] sm:$0xff] 0.0
        %307 = vst [vmem:[#allocation3 + $0x68] sm:$0xff] 0.0
        %308 = vst [vmem:[#allocation3 + $0x70] sm:$0xff] 0.0
        %309 = vst [vmem:[#allocation3 + $0x78] sm:$0xff] 0.0
        loop: start=0, step=1, limit=2
        $region49: #{gcn_forward.3} parent=47 // loop_pre_header
          _
        $region50: #{gcn_forward.3} parent=47 // loop_header
          %s311 = sphi 0, %s315
          %p312 = scmp.ge.s32.totalorder %s311, 2
        $region51: #{gcn_forward.3} parent=47 // loop_header_branch
          %314 = sbr.rel (%p312) target = $region55
        $region52: #{gcn_forward.3} parent=47 // loop_body
          %s316 = smul.u32 %s311, 128
          %s317 = sshra.s32 %s316, 7
          %s318 = sand.u32 %s316, 127
          %s319 = sshra.s32 %s273, 5
          %s320 = sand.u32 %s273, 31
          %s321 = smul.u32 %s319, 2
          %s322 = sadd.s32 %s317, %s321
          %s323 = smul.addr %s322, 8
          %s324 = scalar_lea.vmem %s1, %s323
          %v325 = vld [vmem:[%s324] sm:$0xff]
          %v326 = vld [vmem:[%s324 + $0x10] sm:$0xff]
          %v327 = vld [vmem:[%s324 + $0x20] sm:$0xff]
          %v328 = vld [vmem:[%s324 + $0x30] sm:$0xff]
          %v329 = vunpack.c.l.s8.bf16 %v325
          %v330 = vunpack.c.h.s8.bf16 %v325
          %v331 = vunpack.c.l.s8.bf16 %v326
          %v332 = vunpack.c.h.s8.bf16 %v326
          %v333 = vunpack.c.l.s8.bf16 %v327
          %v334 = vunpack.c.h.s8.bf16 %v327
          %v335 = vunpack.c.l.s8.bf16 %v328
          %v336 = vunpack.c.h.s8.bf16 %v328
          %v337 = vld [vmem:[#allocation3] sm:$0xff]
          %v338 = vld [vmem:[#allocation3 + $0x8] sm:$0xff]
          %v339 = vld [vmem:[#allocation3 + $0x10] sm:$0xff]
          %v340 = vld [vmem:[#allocation3 + $0x18] sm:$0xff]
          %v341 = vld [vmem:[#allocation3 + $0x20] sm:$0xff]
          %v342 = vld [vmem:[#allocation3 + $0x28] sm:$0xff]
          %v343 = vld [vmem:[#allocation3 + $0x30] sm:$0xff]
          %v344 = vld [vmem:[#allocation3 + $0x38] sm:$0xff]
          %v345 = vld [vmem:[#allocation3 + $0x40] sm:$0xff]
          %v346 = vld [vmem:[#allocation3 + $0x48] sm:$0xff]
          %v347 = vld [vmem:[#allocation3 + $0x50] sm:$0xff]
          %v348 = vld [vmem:[#allocation3 + $0x58] sm:$0xff]
          %v349 = vld [vmem:[#allocation3 + $0x60] sm:$0xff]
          %v350 = vld [vmem:[#allocation3 + $0x68] sm:$0xff]
          %v351 = vld [vmem:[#allocation3 + $0x70] sm:$0xff]
          %v352 = vld [vmem:[#allocation3 + $0x78] sm:$0xff]
          %s353 = sshra.s32 %s316, 3
          %s354 = sand.u32 %s316, 7
          %s355 = smul.addr %s353, 4
          %s356 = scalar_lea.vmem %s2, %s355
          %v357 = vld [vmem:[%s356] sm:$0xf]
          %v358 = vld [vmem:[%s356 + $0x4] sm:$0xf]
          %v359 = vld [vmem:[%s356 + $0x8] sm:$0xf]
          %v360 = vld [vmem:[%s356 + $0xc] sm:$0xf]
          %v361 = vld [vmem:[%s356 + $0x10] sm:$0xf]
          %v362 = vld [vmem:[%s356 + $0x14] sm:$0xf]
          %v363 = vld [vmem:[%s356 + $0x18] sm:$0xf]
          %v364 = vld [vmem:[%s356 + $0x1c] sm:$0xf]
          %v365 = vld [vmem:[%s356 + $0x20] sm:$0xf]
          %v366 = vld [vmem:[%s356 + $0x24] sm:$0xf]
          %v367 = vld [vmem:[%s356 + $0x28] sm:$0xf]
          %v368 = vld [vmem:[%s356 + $0x2c] sm:$0xf]
          %v369 = vld [vmem:[%s356 + $0x30] sm:$0xf]
          %v370 = vld [vmem:[%s356 + $0x34] sm:$0xf]
          %v371 = vld [vmem:[%s356 + $0x38] sm:$0xf]
          %v372 = vld [vmem:[%s356 + $0x3c] sm:$0xf]
          %v389 = vunpack.c.l.b16 %v357
          %v390 = vunpack.c.l.b16 %v358
          %v391 = vunpack.c.l.b16 %v359
          %v392 = vunpack.c.l.b16 %v360
          %v393 = vunpack.c.l.b16 %v361
          %v394 = vunpack.c.l.b16 %v362
          %v395 = vunpack.c.l.b16 %v363
          %v396 = vunpack.c.l.b16 %v364
          %v397 = vunpack.c.l.b16 %v365
          %v398 = vunpack.c.l.b16 %v366
          %v399 = vunpack.c.l.b16 %v367
          %v400 = vunpack.c.l.b16 %v368
          %v401 = vunpack.c.l.b16 %v369
          %v402 = vunpack.c.l.b16 %v370
          %v403 = vunpack.c.l.b16 %v371
          %v404 = vunpack.c.l.b16 %v372
          %v405 = vpack.c.b16 %v390, %v389
          %v406 = vpack.c.b16 %v392, %v391
          %v407 = vpack.c.b16 %v394, %v393
          %v408 = vpack.c.b16 %v396, %v395
          %v409 = vpack.c.b16 %v398, %v397
          %v410 = vpack.c.b16 %v400, %v399
          %v411 = vpack.c.b16 %v402, %v401
          %v412 = vpack.c.b16 %v404, %v403
          %421 = vmatprep.subr.bf16.mxu0 0
          %422 = vmatpush1.bf16.msra.mxu0 %v405
          %423 = vmatprep.subr.bf16.mxu0 0
          %424 = vmatpush1.bf16.msra.mxu0 %v406
          %425 = vmatprep.subr.bf16.mxu0 0
          %426 = vmatpush1.bf16.msra.mxu0 %v407
          %427 = vmatprep.subr.bf16.mxu0 0
          %428 = vmatpush1.bf16.msra.mxu0 %v408
          %429 = vmatprep.subr.bf16.mxu0 0
          %430 = vmatpush1.bf16.msra.mxu0 %v409
          %431 = vmatprep.subr.bf16.mxu0 0
          %432 = vmatpush1.bf16.msra.mxu0 %v410
          %433 = vmatprep.subr.bf16.mxu0 0
          %434 = vmatpush1.bf16.msra.mxu0 %v411
          %435 = vmatprep.subr.bf16.mxu0 0
          %436 = vmatpush1.bf16.msra.mxu0 %v412
          %437 = vmatprep.subr.bf16.mxu0 0
          %438 = vmatpush1.bf16.msra.mxu0 0
          %439 = vmatprep.subr.bf16.mxu0 0
          %440 = vmatpush1.bf16.msra.mxu0 0
          %441 = vmatprep.subr.bf16.mxu0 0
          %442 = vmatpush1.bf16.msra.mxu0 0
          %443 = vmatprep.subr.bf16.mxu0 0
          %444 = vmatpush1.bf16.msra.mxu0 0
          %445 = vmatprep.subr.bf16.mxu0 0
          %446 = vmatpush1.bf16.msra.mxu0 0
          %447 = vmatprep.subr.bf16.mxu0 0
          %448 = vmatpush1.bf16.msra.mxu0 0
          %449 = vmatprep.subr.bf16.mxu0 0
          %450 = vmatpush1.bf16.msra.mxu0 0
          %451 = vmatprep.subr.bf16.mxu0 0
          %452 = vmatpush1.bf16.msra.mxu0 0
          %453 = vmatprep.mubr.bf16.mxu0 0
          %454 = vmatmul.mubr.bf16.gmra.mrb[0].mxu0 %v329
          %v455 = vpop.f32.mrb[0].mxu0
          %v456 = vadd.f32 0.0, %v455
          %v457 = vpop.f32.mrb[0].mxu0
          %v458 = vpop.f32.mrb[0].mxu0
          %v459 = vadd.f32 0.0, %v458
          %v460 = vpop.f32.mrb[0].mxu0
          %461 = vmatprep.mubr.bf16.mxu0 0
          %462 = vmatmul.mubr.bf16.gmra.mrb[0].mxu0 %v330
          %v463 = vpop.f32.mrb[0].mxu0
          %v464 = vadd.f32 0.0, %v463
          %v465 = vpop.f32.mrb[0].mxu0
          %v466 = vpop.f32.mrb[0].mxu0
          %v467 = vadd.f32 0.0, %v466
          %v468 = vpop.f32.mrb[0].mxu0
          %469 = vmatprep.mubr.bf16.mxu0 0
          %470 = vmatmul.mubr.bf16.gmra.mrb[0].mxu0 %v331
          %v471 = vpop.f32.mrb[0].mxu0
          %v472 = vadd.f32 0.0, %v471
          %v473 = vpop.f32.mrb[0].mxu0
          %v474 = vpop.f32.mrb[0].mxu0
          %v475 = vadd.f32 0.0, %v474
          %v476 = vpop.f32.mrb[0].mxu0
          %477 = vmatprep.mubr.bf16.mxu0 0
          %478 = vmatmul.mubr.bf16.gmra.mrb[0].mxu0 %v332
          %v479 = vpop.f32.mrb[0].mxu0
          %v480 = vadd.f32 0.0, %v479
          %v481 = vpop.f32.mrb[0].mxu0
          %v482 = vpop.f32.mrb[0].mxu0
          %v483 = vadd.f32 0.0, %v482
          %v484 = vpop.f32.mrb[0].mxu0
          %485 = vmatprep.mubr.bf16.mxu0 0
          %486 = vmatmul.mubr.bf16.gmra.mrb[0].mxu0 %v333
          %v487 = vpop.f32.mrb[0].mxu0
          %v488 = vadd.f32 0.0, %v487
          %v489 = vpop.f32.mrb[0].mxu0
          %v490 = vpop.f32.mrb[0].mxu0
          %v491 = vadd.f32 0.0, %v490
          %v492 = vpop.f32.mrb[0].mxu0
          %493 = vmatprep.mubr.bf16.mxu0 0
          %494 = vmatmul.mubr.bf16.gmra.mrb[0].mxu0 %v334
          %v495 = vpop.f32.mrb[0].mxu0
          %v496 = vadd.f32 0.0, %v495
          %v497 = vpop.f32.mrb[0].mxu0
          %v498 = vpop.f32.mrb[0].mxu0
          %v499 = vadd.f32 0.0, %v498
          %v500 = vpop.f32.mrb[0].mxu0
          %501 = vmatprep.mubr.bf16.mxu0 0
          %502 = vmatmul.mubr.bf16.gmra.mrb[0].mxu0 %v335
          %v503 = vpop.f32.mrb[0].mxu0
          %v504 = vadd.f32 0.0, %v503
          %v505 = vpop.f32.mrb[0].mxu0
          %v506 = vpop.f32.mrb[0].mxu0
          %v507 = vadd.f32 0.0, %v506
          %v508 = vpop.f32.mrb[0].mxu0
          %509 = vmatprep.mubr.bf16.mxu0 0
          %510 = vmatmul.mubr.bf16.gmra.mrb[0].mxu0 %v336
          %v511 = vpop.f32.mrb[0].mxu0
          %v512 = vadd.f32 0.0, %v511
          %v513 = vpop.f32.mrb[0].mxu0
          %v514 = vpop.f32.mrb[0].mxu0
          %v515 = vadd.f32 0.0, %v514
          %v516 = vpop.f32.mrb[0].mxu0
          %517 = vdwg.mxu0
          %v518 = vadd.f32 %v337, %v456
          %v519 = vadd.f32 %v338, %v459
          %v520 = vadd.f32 %v339, %v464
          %v521 = vadd.f32 %v340, %v467
          %v522 = vadd.f32 %v341, %v472
          %v523 = vadd.f32 %v342, %v475
          %v524 = vadd.f32 %v343, %v480
          %v525 = vadd.f32 %v344, %v483
          %v526 = vadd.f32 %v345, %v488
          %v527 = vadd.f32 %v346, %v491
          %v528 = vadd.f32 %v347, %v496
          %v529 = vadd.f32 %v348, %v499
          %v530 = vadd.f32 %v349, %v504
          %v531 = vadd.f32 %v350, %v507
          %v532 = vadd.f32 %v351, %v512
          %v533 = vadd.f32 %v352, %v515
          %534 = vst [vmem:[#allocation3] sm:$0xff] %v518
          %535 = vst [vmem:[#allocation3 + $0x8] sm:$0xff] %v519
          %536 = vst [vmem:[#allocation3 + $0x10] sm:$0xff] %v520
          %537 = vst [vmem:[#allocation3 + $0x18] sm:$0xff] %v521
          %538 = vst [vmem:[#allocation3 + $0x20] sm:$0xff] %v522
          %539 = vst [vmem:[#allocation3 + $0x28] sm:$0xff] %v523
          %540 = vst [vmem:[#allocation3 + $0x30] sm:$0xff] %v524
          %541 = vst [vmem:[#allocation3 + $0x38] sm:$0xff] %v525
          %542 = vst [vmem:[#allocation3 + $0x40] sm:$0xff] %v526
          %543 = vst [vmem:[#allocation3 + $0x48] sm:$0xff] %v527
          %544 = vst [vmem:[#allocation3 + $0x50] sm:$0xff] %v528
          %545 = vst [vmem:[#allocation3 + $0x58] sm:$0xff] %v529
          %546 = vst [vmem:[#allocation3 + $0x60] sm:$0xff] %v530
          %547 = vst [vmem:[#allocation3 + $0x68] sm:$0xff] %v531
          %548 = vst [vmem:[#allocation3 + $0x70] sm:$0xff] %v532
          %549 = vst [vmem:[#allocation3 + $0x78] sm:$0xff] %v533
        $region53: #{gcn_forward.3} parent=47 // loop_footer
          %s315 = sadd.s32 1, %s311
        $region54: #{gcn_forward.3} parent=47 // loop_footer_branch
          %310 = sbr.rel target = $region50
        $region55: #{gcn_forward.3} parent=47 // loop_exit
          _
        %v550 = vld [vmem:[#allocation3] sm:$0xff]
        %v551 = vld [vmem:[#allocation3 + $0x8] sm:$0xff]
        %v552 = vld [vmem:[#allocation3 + $0x10] sm:$0xff]
        %v553 = vld [vmem:[#allocation3 + $0x18] sm:$0xff]
        %v554 = vld [vmem:[#allocation3 + $0x20] sm:$0xff]
        %v555 = vld [vmem:[#allocation3 + $0x28] sm:$0xff]
        %v556 = vld [vmem:[#allocation3 + $0x30] sm:$0xff]
        %v557 = vld [vmem:[#allocation3 + $0x38] sm:$0xff]
        %v558 = vld [vmem:[#allocation3 + $0x40] sm:$0xff]
        %v559 = vld [vmem:[#allocation3 + $0x48] sm:$0xff]
        %v560 = vld [vmem:[#allocation3 + $0x50] sm:$0xff]
        %v561 = vld [vmem:[#allocation3 + $0x58] sm:$0xff]
        %v562 = vld [vmem:[#allocation3 + $0x60] sm:$0xff]
        %v563 = vld [vmem:[#allocation3 + $0x68] sm:$0xff]
        %v564 = vld [vmem:[#allocation3 + $0x70] sm:$0xff]
        %v565 = vld [vmem:[#allocation3 + $0x78] sm:$0xff]
        %567 = vset.pattern.permute.xlu0 0
        %568 = vperm.xlu0 %567, %v274
        %v569 = vpop.permute.xlu0 %568
        %572 = vset.pattern.permute.xlu0 0
        %573 = vperm.xlu0 %572, %v275
        %v574 = vpop.permute.xlu0 %573
        %577 = vset.pattern.permute.xlu0 0
        %578 = vperm.xlu0 %577, %v276
        %v579 = vpop.permute.xlu0 %578
        %582 = vset.pattern.permute.xlu0 0
        %583 = vperm.xlu0 %582, %v277
        %v584 = vpop.permute.xlu0 %583
        %587 = vset.pattern.permute.xlu0 0
        %588 = vperm.xlu0 %587, %v278
        %v589 = vpop.permute.xlu0 %588
        %592 = vset.pattern.permute.xlu0 0
        %593 = vperm.xlu0 %592, %v279
        %v594 = vpop.permute.xlu0 %593
        %597 = vset.pattern.permute.xlu0 0
        %598 = vperm.xlu0 %597, %v280
        %v599 = vpop.permute.xlu0 %598
        %602 = vset.pattern.permute.xlu0 0
        %603 = vperm.xlu0 %602, %v281
        %v604 = vpop.permute.xlu0 %603
        %607 = vset.pattern.permute.xlu0 0
        %608 = vperm.xlu0 %607, %v282
        %v609 = vpop.permute.xlu0 %608
        %612 = vset.pattern.permute.xlu0 0
        %613 = vperm.xlu0 %612, %v283
        %v614 = vpop.permute.xlu0 %613
        %617 = vset.pattern.permute.xlu0 0
        %618 = vperm.xlu0 %617, %v284
        %v619 = vpop.permute.xlu0 %618
        %622 = vset.pattern.permute.xlu0 0
        %623 = vperm.xlu0 %622, %v285
        %v624 = vpop.permute.xlu0 %623
        %627 = vset.pattern.permute.xlu0 0
        %628 = vperm.xlu0 %627, %v286
        %v629 = vpop.permute.xlu0 %628
        %632 = vset.pattern.permute.xlu0 0
        %633 = vperm.xlu0 %632, %v287
        %v634 = vpop.permute.xlu0 %633
        %637 = vset.pattern.permute.xlu0 0
        %638 = vperm.xlu0 %637, %v288
        %v639 = vpop.permute.xlu0 %638
        %642 = vset.pattern.permute.xlu0 0
        %643 = vperm.xlu0 %642, %v289
        %v644 = vpop.permute.xlu0 %643
        %v646 = vmul.f32 %v569, %v550
        %v647 = vmul.f32 %v574, %v551
        %v648 = vmul.f32 %v579, %v552
        %v649 = vmul.f32 %v584, %v553
        %v650 = vmul.f32 %v589, %v554
        %v651 = vmul.f32 %v594, %v555
        %v652 = vmul.f32 %v599, %v556
        %v653 = vmul.f32 %v604, %v557
        %v654 = vmul.f32 %v609, %v558
        %v655 = vmul.f32 %v614, %v559
        %v656 = vmul.f32 %v619, %v560
        %v657 = vmul.f32 %v624, %v561
        %v658 = vmul.f32 %v629, %v562
        %v659 = vmul.f32 %v634, %v563
        %v660 = vmul.f32 %v639, %v564
        %v661 = vmul.f32 %v644, %v565
        %v662 = vld [vmem:[%s3] sm:$0x1]
        %v664 = vlaneseq
        %v665 = vshrl.u32 %v664, 7
        %v666 = vsub.s32 0, %v665
        %v667 = vrot.slane %v662, %v666
        %v669 = vadd.f32 %v646, %v667
        %v670 = vadd.f32 %v647, %v667
        %v671 = vadd.f32 %v648, %v667
        %v672 = vadd.f32 %v649, %v667
        %v673 = vadd.f32 %v650, %v667
        %v674 = vadd.f32 %v651, %v667
        %v675 = vadd.f32 %v652, %v667
        %v676 = vadd.f32 %v653, %v667
        %v677 = vadd.f32 %v654, %v667
        %v678 = vadd.f32 %v655, %v667
        %v679 = vadd.f32 %v656, %v667
        %v680 = vadd.f32 %v657, %v667
        %v681 = vadd.f32 %v658, %v667
        %v682 = vadd.f32 %v659, %v667
        %v683 = vadd.f32 %v660, %v667
        %v684 = vadd.f32 %v661, %v667
        %v685 = vmax.f32 %v669, 0.0
        %v686 = vmax.f32 %v670, 0.0
        %v687 = vmax.f32 %v671, 0.0
        %v688 = vmax.f32 %v672, 0.0
        %v689 = vmax.f32 %v673, 0.0
        %v690 = vmax.f32 %v674, 0.0
        %v691 = vmax.f32 %v675, 0.0
        %v692 = vmax.f32 %v676, 0.0
        %v693 = vmax.f32 %v677, 0.0
        %v694 = vmax.f32 %v678, 0.0
        %v695 = vmax.f32 %v679, 0.0
        %v696 = vmax.f32 %v680, 0.0
        %v697 = vmax.f32 %v681, 0.0
        %v698 = vmax.f32 %v682, 0.0
        %v699 = vmax.f32 %v683, 0.0
        %v700 = vmax.f32 %v684, 0.0
        %v701 = vpack.c.bf16 %v686, %v685
        %v702 = vpack.c.bf16 %v688, %v687
        %v703 = vpack.c.bf16 %v690, %v689
        %v704 = vpack.c.bf16 %v692, %v691
        %v705 = vpack.c.bf16 %v694, %v693
        %v706 = vpack.c.bf16 %v696, %v695
        %v707 = vpack.c.bf16 %v698, %v697
        %v708 = vpack.c.bf16 %v700, %v699
        %v709 = vld [vmem:[%s4] sm:$0xf]
        %v710 = vld [vmem:[%s4 + $0x4] sm:$0xf]
        %v711 = vld [vmem:[%s4 + $0x8] sm:$0xf]
        %v712 = vld [vmem:[%s4 + $0xc] sm:$0xf]
        %v713 = vld [vmem:[%s4 + $0x10] sm:$0xf]
        %v714 = vld [vmem:[%s4 + $0x14] sm:$0xf]
        %v715 = vld [vmem:[%s4 + $0x18] sm:$0xf]
        %v716 = vld [vmem:[%s4 + $0x1c] sm:$0xf]
        %v717 = vld [vmem:[%s4 + $0x20] sm:$0xf]
        %v718 = vld [vmem:[%s4 + $0x24] sm:$0xf]
        %v719 = vld [vmem:[%s4 + $0x28] sm:$0xf]
        %v720 = vld [vmem:[%s4 + $0x2c] sm:$0xf]
        %v721 = vld [vmem:[%s4 + $0x30] sm:$0xf]
        %v722 = vld [vmem:[%s4 + $0x34] sm:$0xf]
        %v723 = vld [vmem:[%s4 + $0x38] sm:$0xf]
        %v724 = vld [vmem:[%s4 + $0x3c] sm:$0xf]
        %v741 = vunpack.c.l.b16 %v709
        %v742 = vunpack.c.l.b16 %v710
        %v743 = vunpack.c.l.b16 %v711
        %v744 = vunpack.c.l.b16 %v712
        %v745 = vunpack.c.l.b16 %v713
        %v746 = vunpack.c.l.b16 %v714
        %v747 = vunpack.c.l.b16 %v715
        %v748 = vunpack.c.l.b16 %v716
        %v749 = vunpack.c.l.b16 %v717
        %v750 = vunpack.c.l.b16 %v718
        %v751 = vunpack.c.l.b16 %v719
        %v752 = vunpack.c.l.b16 %v720
        %v753 = vunpack.c.l.b16 %v721
        %v754 = vunpack.c.l.b16 %v722
        %v755 = vunpack.c.l.b16 %v723
        %v756 = vunpack.c.l.b16 %v724
        %v757 = vpack.c.b16 %v742, %v741
        %v758 = vpack.c.b16 %v744, %v743
        %v759 = vpack.c.b16 %v746, %v745
        %v760 = vpack.c.b16 %v748, %v747
        %v761 = vpack.c.b16 %v750, %v749
        %v762 = vpack.c.b16 %v752, %v751
        %v763 = vpack.c.b16 %v754, %v753
        %v764 = vpack.c.b16 %v756, %v755
        %773 = vmatprep.subr.bf16.mxu0 0
        %774 = vmatpush1.bf16.msra.mxu0 %v757
        %775 = vmatprep.subr.bf16.mxu0 0
        %776 = vmatpush1.bf16.msra.mxu0 %v758
        %777 = vmatprep.subr.bf16.mxu0 0
        %778 = vmatpush1.bf16.msra.mxu0 %v759
        %779 = vmatprep.subr.bf16.mxu0 0
        %780 = vmatpush1.bf16.msra.mxu0 %v760
        %781 = vmatprep.subr.bf16.mxu0 0
        %782 = vmatpush1.bf16.msra.mxu0 %v761
        %783 = vmatprep.subr.bf16.mxu0 0
        %784 = vmatpush1.bf16.msra.mxu0 %v762
        %785 = vmatprep.subr.bf16.mxu0 0
        %786 = vmatpush1.bf16.msra.mxu0 %v763
        %787 = vmatprep.subr.bf16.mxu0 0
        %788 = vmatpush1.bf16.msra.mxu0 %v764
        %789 = vmatprep.subr.bf16.mxu0 0
        %790 = vmatpush1.bf16.msra.mxu0 0
        %791 = vmatprep.subr.bf16.mxu0 0
        %792 = vmatpush1.bf16.msra.mxu0 0
        %793 = vmatprep.subr.bf16.mxu0 0
        %794 = vmatpush1.bf16.msra.mxu0 0
        %795 = vmatprep.subr.bf16.mxu0 0
        %796 = vmatpush1.bf16.msra.mxu0 0
        %797 = vmatprep.subr.bf16.mxu0 0
        %798 = vmatpush1.bf16.msra.mxu0 0
        %799 = vmatprep.subr.bf16.mxu0 0
        %800 = vmatpush1.bf16.msra.mxu0 0
        %801 = vmatprep.subr.bf16.mxu0 0
        %802 = vmatpush1.bf16.msra.mxu0 0
        %803 = vmatprep.subr.bf16.mxu0 0
        %804 = vmatpush1.bf16.msra.mxu0 0
        %805 = vmatprep.mubr.bf16.mxu0 0
        %806 = vmatmul.mubr.bf16.gmra.mrb[0].mxu0 %v701
        %v807 = vpop.f32.mrb[0].mxu0
        %v808 = vadd.f32 0.0, %v807
        %v809 = vpop.f32.mrb[0].mxu0
        %v810 = vpop.f32.mrb[0].mxu0
        %v811 = vadd.f32 0.0, %v810
        %v812 = vpop.f32.mrb[0].mxu0
        %813 = vmatprep.mubr.bf16.mxu0 0
        %814 = vmatmul.mubr.bf16.gmra.mrb[0].mxu0 %v702
        %v815 = vpop.f32.mrb[0].mxu0
        %v816 = vadd.f32 0.0, %v815
        %v817 = vpop.f32.mrb[0].mxu0
        %v818 = vpop.f32.mrb[0].mxu0
        %v819 = vadd.f32 0.0, %v818
        %v820 = vpop.f32.mrb[0].mxu0
        %821 = vmatprep.mubr.bf16.mxu0 0
        %822 = vmatmul.mubr.bf16.gmra.mrb[0].mxu0 %v703
        %v823 = vpop.f32.mrb[0].mxu0
        %v824 = vadd.f32 0.0, %v823
        %v825 = vpop.f32.mrb[0].mxu0
        %v826 = vpop.f32.mrb[0].mxu0
        %v827 = vadd.f32 0.0, %v826
        %v828 = vpop.f32.mrb[0].mxu0
        %829 = vmatprep.mubr.bf16.mxu0 0
        %830 = vmatmul.mubr.bf16.gmra.mrb[0].mxu0 %v704
        %v831 = vpop.f32.mrb[0].mxu0
        %v832 = vadd.f32 0.0, %v831
        %v833 = vpop.f32.mrb[0].mxu0
        %v834 = vpop.f32.mrb[0].mxu0
        %v835 = vadd.f32 0.0, %v834
        %v836 = vpop.f32.mrb[0].mxu0
        %837 = vmatprep.mubr.bf16.mxu0 0
        %838 = vmatmul.mubr.bf16.gmra.mrb[0].mxu0 %v705
        %v839 = vpop.f32.mrb[0].mxu0
        %v840 = vadd.f32 0.0, %v839
        %v841 = vpop.f32.mrb[0].mxu0
        %v842 = vpop.f32.mrb[0].mxu0
        %v843 = vadd.f32 0.0, %v842
        %v844 = vpop.f32.mrb[0].mxu0
        %845 = vmatprep.mubr.bf16.mxu0 0
        %846 = vmatmul.mubr.bf16.gmra.mrb[0].mxu0 %v706
        %v847 = vpop.f32.mrb[0].mxu0
        %v848 = vadd.f32 0.0, %v847
        %v849 = vpop.f32.mrb[0].mxu0
        %v850 = vpop.f32.mrb[0].mxu0
        %v851 = vadd.f32 0.0, %v850
        %v852 = vpop.f32.mrb[0].mxu0
        %853 = vmatprep.mubr.bf16.mxu0 0
        %854 = vmatmul.mubr.bf16.gmra.mrb[0].mxu0 %v707
        %v855 = vpop.f32.mrb[0].mxu0
        %v856 = vadd.f32 0.0, %v855
        %v857 = vpop.f32.mrb[0].mxu0
        %v858 = vpop.f32.mrb[0].mxu0
        %v859 = vadd.f32 0.0, %v858
        %v860 = vpop.f32.mrb[0].mxu0
        %861 = vmatprep.mubr.bf16.mxu0 0
        %862 = vmatmul.mubr.bf16.gmra.mrb[0].mxu0 %v708
        %v863 = vpop.f32.mrb[0].mxu0
        %v864 = vadd.f32 0.0, %v863
        %v865 = vpop.f32.mrb[0].mxu0
        %v866 = vpop.f32.mrb[0].mxu0
        %v867 = vadd.f32 0.0, %v866
        %v868 = vpop.f32.mrb[0].mxu0
        %869 = vdwg.mxu0
        %v870 = vmul.f32 %v569, %v808
        %v871 = vmul.f32 %v574, %v811
        %v872 = vmul.f32 %v579, %v816
        %v873 = vmul.f32 %v584, %v819
        %v874 = vmul.f32 %v589, %v824
        %v875 = vmul.f32 %v594, %v827
        %v876 = vmul.f32 %v599, %v832
        %v877 = vmul.f32 %v604, %v835
        %v878 = vmul.f32 %v609, %v840
        %v879 = vmul.f32 %v614, %v843
        %v880 = vmul.f32 %v619, %v848
        %v881 = vmul.f32 %v624, %v851
        %v882 = vmul.f32 %v629, %v856
        %v883 = vmul.f32 %v634, %v859
        %v884 = vmul.f32 %v639, %v864
        %v885 = vmul.f32 %v644, %v867
        %v886 = vpack.c.bf16 %v871, %v870
        %v887 = vpack.c.bf16 %v873, %v872
        %v888 = vpack.c.bf16 %v875, %v874
        %v889 = vpack.c.bf16 %v877, %v876
        %v890 = vpack.c.bf16 %v879, %v878
        %v891 = vpack.c.bf16 %v881, %v880
        %v892 = vpack.c.bf16 %v883, %v882
        %v893 = vpack.c.bf16 %v885, %v884
        %s894 = sshra.s32 %s273, 4
        %s895 = sand.u32 %s273, 15
        %s896 = smul.addr %s894, 8
        %s897 = scalar_lea.vmem [#allocation2], %s896
        %898 = vst [vmem:[%s897] sm:$0xff] %v886
        %899 = vst [vmem:[%s897 + $0x8] sm:$0xff] %v887
        %900 = vst [vmem:[%s897 + $0x10] sm:$0xff] %v888
        %901 = vst [vmem:[%s897 + $0x18] sm:$0xff] %v889
        %902 = vst [vmem:[%s897 + $0x20] sm:$0xff] %v890
        %903 = vst [vmem:[%s897 + $0x28] sm:$0xff] %v891
        %904 = vst [vmem:[%s897 + $0x30] sm:$0xff] %v892
        %905 = vst [vmem:[%s897 + $0x38] sm:$0xff] %v893
      $region48: #{gcn_forward.3} parent=43 // pred_fallthru
        _
      %p906 = scmp.eq.s32.totalorder %s21, 1
      // Predicated region
      $region56: #{gcn_forward.3} parent=43 // pred_check
        %p907 = pneg %p906
      $region57: #{gcn_forward.3} parent=43 // pred_check_branch
        %909 = sbr.rel (%p907) target = $region59
      $region58: #{gcn_forward.3} parent=43 // pred_region
        %910 = vst [vmem:[#allocation3] sm:$0xff] 0.0
        %911 = vst [vmem:[#allocation3 + $0x8] sm:$0xff] 0.0
        %912 = vst [vmem:[#allocation3 + $0x10] sm:$0xff] 0.0
        %913 = vst [vmem:[#allocation3 + $0x18] sm:$0xff] 0.0
        %914 = vst [vmem:[#allocation3 + $0x20] sm:$0xff] 0.0
        %915 = vst [vmem:[#allocation3 + $0x28] sm:$0xff] 0.0
        %916 = vst [vmem:[#allocation3 + $0x30] sm:$0xff] 0.0
        %917 = vst [vmem:[#allocation3 + $0x38] sm:$0xff] 0.0
        %918 = vst [vmem:[#allocation3 + $0x40] sm:$0xff] 0.0
        %919 = vst [vmem:[#allocation3 + $0x48] sm:$0xff] 0.0
        %920 = vst [vmem:[#allocation3 + $0x50] sm:$0xff] 0.0
        %921 = vst [vmem:[#allocation3 + $0x58] sm:$0xff] 0.0
        %922 = vst [vmem:[#allocation3 + $0x60] sm:$0xff] 0.0
        %923 = vst [vmem:[#allocation3 + $0x68] sm:$0xff] 0.0
        %924 = vst [vmem:[#allocation3 + $0x70] sm:$0xff] 0.0
        %925 = vst [vmem:[#allocation3 + $0x78] sm:$0xff] 0.0
        loop: start=0, step=1, limit=2
        $region60: #{gcn_forward.3} parent=58 // loop_pre_header
          _
        $region61: #{gcn_forward.3} parent=58 // loop_header
          %s927 = sphi 0, %s931
          %p928 = scmp.ge.s32.totalorder %s927, 2
        $region62: #{gcn_forward.3} parent=58 // loop_header_branch
          %930 = sbr.rel (%p928) target = $region66
        $region63: #{gcn_forward.3} parent=58 // loop_body
          %s932 = smul.u32 %s927, 128
          %s933 = sshra.s32 %s932, 7
          %s934 = sand.u32 %s932, 127
          %s935 = sshra.s32 %s273, 5
          %s936 = sand.u32 %s273, 31
          %s937 = smul.u32 %s935, 2
          %s938 = sadd.s32 %s933, %s937
          %s939 = smul.addr %s938, 8
          %s940 = scalar_lea.vmem %s1, %s939
          %v941 = vld [vmem:[%s940] sm:$0xff]
          %v942 = vld [vmem:[%s940 + $0x10] sm:$0xff]
          %v943 = vld [vmem:[%s940 + $0x20] sm:$0xff]
          %v944 = vld [vmem:[%s940 + $0x30] sm:$0xff]
          %v945 = vunpack.c.l.s8.bf16 %v941
          %v946 = vunpack.c.h.s8.bf16 %v941
          %v947 = vunpack.c.l.s8.bf16 %v942
          %v948 = vunpack.c.h.s8.bf16 %v942
          %v949 = vunpack.c.l.s8.bf16 %v943
          %v950 = vunpack.c.h.s8.bf16 %v943
          %v951 = vunpack.c.l.s8.bf16 %v944
          %v952 = vunpack.c.h.s8.bf16 %v944
          %v953 = vld [vmem:[#allocation3] sm:$0xff]
          %v954 = vld [vmem:[#allocation3 + $0x8] sm:$0xff]
          %v955 = vld [vmem:[#allocation3 + $0x10] sm:$0xff]
          %v956 = vld [vmem:[#allocation3 + $0x18] sm:$0xff]
          %v957 = vld [vmem:[#allocation3 + $0x20] sm:$0xff]
          %v958 = vld [vmem:[#allocation3 + $0x28] sm:$0xff]
          %v959 = vld [vmem:[#allocation3 + $0x30] sm:$0xff]
          %v960 = vld [vmem:[#allocation3 + $0x38] sm:$0xff]
          %v961 = vld [vmem:[#allocation3 + $0x40] sm:$0xff]
          %v962 = vld [vmem:[#allocation3 + $0x48] sm:$0xff]
          %v963 = vld [vmem:[#allocation3 + $0x50] sm:$0xff]
          %v964 = vld [vmem:[#allocation3 + $0x58] sm:$0xff]
          %v965 = vld [vmem:[#allocation3 + $0x60] sm:$0xff]
          %v966 = vld [vmem:[#allocation3 + $0x68] sm:$0xff]
          %v967 = vld [vmem:[#allocation3 + $0x70] sm:$0xff]
          %v968 = vld [vmem:[#allocation3 + $0x78] sm:$0xff]
          %s969 = sshra.s32 %s932, 4
          %s970 = sand.u32 %s932, 15
          %s971 = smul.addr %s969, 8
          %s972 = scalar_lea.vmem [#allocation2], %s971
          %v973 = vld [vmem:[%s972] sm:$0xff]
          %v974 = vld [vmem:[%s972 + $0x8] sm:$0xff]
          %v975 = vld [vmem:[%s972 + $0x10] sm:$0xff]
          %v976 = vld [vmem:[%s972 + $0x18] sm:$0xff]
          %v977 = vld [vmem:[%s972 + $0x20] sm:$0xff]
          %v978 = vld [vmem:[%s972 + $0x28] sm:$0xff]
          %v979 = vld [vmem:[%s972 + $0x30] sm:$0xff]
          %v980 = vld [vmem:[%s972 + $0x38] sm:$0xff]
          %981 = vmatprep.subr.bf16.mxu0 0
          %982 = vmatpush1.bf16.msra.mxu0 %v973
          %983 = vmatprep.subr.bf16.mxu0 0
          %984 = vmatpush1.bf16.msra.mxu0 %v974
          %985 = vmatprep.subr.bf16.mxu0 0
          %986 = vmatpush1.bf16.msra.mxu0 %v975
          %987 = vmatprep.subr.bf16.mxu0 0
          %988 = vmatpush1.bf16.msra.mxu0 %v976
          %989 = vmatprep.subr.bf16.mxu0 0
          %990 = vmatpush1.bf16.msra.mxu0 %v977
          %991 = vmatprep.subr.bf16.mxu0 0
          %992 = vmatpush1.bf16.msra.mxu0 %v978
          %993 = vmatprep.subr.bf16.mxu0 0
          %994 = vmatpush1.bf16.msra.mxu0 %v979
          %995 = vmatprep.subr.bf16.mxu0 0
          %996 = vmatpush1.bf16.msra.mxu0 %v980
          %997 = vmatprep.subr.bf16.mxu0 0
          %998 = vmatpush1.bf16.msra.mxu0 0
          %999 = vmatprep.subr.bf16.mxu0 0
          %1000 = vmatpush1.bf16.msra.mxu0 0
          %1001 = vmatprep.subr.bf16.mxu0 0
          %1002 = vmatpush1.bf16.msra.mxu0 0
          %1003 = vmatprep.subr.bf16.mxu0 0
          %1004 = vmatpush1.bf16.msra.mxu0 0
          %1005 = vmatprep.subr.bf16.mxu0 0
          %1006 = vmatpush1.bf16.msra.mxu0 0
          %1007 = vmatprep.subr.bf16.mxu0 0
          %1008 = vmatpush1.bf16.msra.mxu0 0
          %1009 = vmatprep.subr.bf16.mxu0 0
          %1010 = vmatpush1.bf16.msra.mxu0 0
          %1011 = vmatprep.subr.bf16.mxu0 0
          %1012 = vmatpush1.bf16.msra.mxu0 0
          %1013 = vmatprep.mubr.bf16.mxu0 0
          %1014 = vmatmul.mubr.bf16.gmra.mrb[0].mxu0 %v945
          %v1015 = vpop.f32.mrb[0].mxu0
          %v1016 = vadd.f32 0.0, %v1015
          %v1017 = vpop.f32.mrb[0].mxu0
          %v1018 = vpop.f32.mrb[0].mxu0
          %v1019 = vadd.f32 0.0, %v1018
          %v1020 = vpop.f32.mrb[0].mxu0
          %1021 = vmatprep.mubr.bf16.mxu0 0
          %1022 = vmatmul.mubr.bf16.gmra.mrb[0].mxu0 %v946
          %v1023 = vpop.f32.mrb[0].mxu0
          %v1024 = vadd.f32 0.0, %v1023
          %v1025 = vpop.f32.mrb[0].mxu0
          %v1026 = vpop.f32.mrb[0].mxu0
          %v1027 = vadd.f32 0.0, %v1026
          %v1028 = vpop.f32.mrb[0].mxu0
          %1029 = vmatprep.mubr.bf16.mxu0 0
          %1030 = vmatmul.mubr.bf16.gmra.mrb[0].mxu0 %v947
          %v1031 = vpop.f32.mrb[0].mxu0
          %v1032 = vadd.f32 0.0, %v1031
          %v1033 = vpop.f32.mrb[0].mxu0
          %v1034 = vpop.f32.mrb[0].mxu0
          %v1035 = vadd.f32 0.0, %v1034
          %v1036 = vpop.f32.mrb[0].mxu0
          %1037 = vmatprep.mubr.bf16.mxu0 0
          %1038 = vmatmul.mubr.bf16.gmra.mrb[0].mxu0 %v948
          %v1039 = vpop.f32.mrb[0].mxu0
          %v1040 = vadd.f32 0.0, %v1039
          %v1041 = vpop.f32.mrb[0].mxu0
          %v1042 = vpop.f32.mrb[0].mxu0
          %v1043 = vadd.f32 0.0, %v1042
          %v1044 = vpop.f32.mrb[0].mxu0
          %1045 = vmatprep.mubr.bf16.mxu0 0
          %1046 = vmatmul.mubr.bf16.gmra.mrb[0].mxu0 %v949
          %v1047 = vpop.f32.mrb[0].mxu0
          %v1048 = vadd.f32 0.0, %v1047
          %v1049 = vpop.f32.mrb[0].mxu0
          %v1050 = vpop.f32.mrb[0].mxu0
          %v1051 = vadd.f32 0.0, %v1050
          %v1052 = vpop.f32.mrb[0].mxu0
          %1053 = vmatprep.mubr.bf16.mxu0 0
          %1054 = vmatmul.mubr.bf16.gmra.mrb[0].mxu0 %v950
          %v1055 = vpop.f32.mrb[0].mxu0
          %v1056 = vadd.f32 0.0, %v1055
          %v1057 = vpop.f32.mrb[0].mxu0
          %v1058 = vpop.f32.mrb[0].mxu0
          %v1059 = vadd.f32 0.0, %v1058
          %v1060 = vpop.f32.mrb[0].mxu0
          %1061 = vmatprep.mubr.bf16.mxu0 0
          %1062 = vmatmul.mubr.bf16.gmra.mrb[0].mxu0 %v951
          %v1063 = vpop.f32.mrb[0].mxu0
          %v1064 = vadd.f32 0.0, %v1063
          %v1065 = vpop.f32.mrb[0].mxu0
          %v1066 = vpop.f32.mrb[0].mxu0
          %v1067 = vadd.f32 0.0, %v1066
          %v1068 = vpop.f32.mrb[0].mxu0
          %1069 = vmatprep.mubr.bf16.mxu0 0
          %1070 = vmatmul.mubr.bf16.gmra.mrb[0].mxu0 %v952
          %v1071 = vpop.f32.mrb[0].mxu0
          %v1072 = vadd.f32 0.0, %v1071
          %v1073 = vpop.f32.mrb[0].mxu0
          %v1074 = vpop.f32.mrb[0].mxu0
          %v1075 = vadd.f32 0.0, %v1074
          %v1076 = vpop.f32.mrb[0].mxu0
          %1077 = vdwg.mxu0
          %v1078 = vadd.f32 %v953, %v1016
          %v1079 = vadd.f32 %v954, %v1019
          %v1080 = vadd.f32 %v955, %v1024
          %v1081 = vadd.f32 %v956, %v1027
          %v1082 = vadd.f32 %v957, %v1032
          %v1083 = vadd.f32 %v958, %v1035
          %v1084 = vadd.f32 %v959, %v1040
          %v1085 = vadd.f32 %v960, %v1043
          %v1086 = vadd.f32 %v961, %v1048
          %v1087 = vadd.f32 %v962, %v1051
          %v1088 = vadd.f32 %v963, %v1056
          %v1089 = vadd.f32 %v964, %v1059
          %v1090 = vadd.f32 %v965, %v1064
          %v1091 = vadd.f32 %v966, %v1067
          %v1092 = vadd.f32 %v967, %v1072
          %v1093 = vadd.f32 %v968, %v1075
          %1094 = vst [vmem:[#allocation3] sm:$0xff] %v1078
          %1095 = vst [vmem:[#allocation3 + $0x8] sm:$0xff] %v1079
          %1096 = vst [vmem:[#allocation3 + $0x10] sm:$0xff] %v1080
          %1097 = vst [vmem:[#allocation3 + $0x18] sm:$0xff] %v1081
          %1098 = vst [vmem:[#allocation3 + $0x20] sm:$0xff] %v1082
          %1099 = vst [vmem:[#allocation3 + $0x28] sm:$0xff] %v1083
          %1100 = vst [vmem:[#allocation3 + $0x30] sm:$0xff] %v1084
          %1101 = vst [vmem:[#allocation3 + $0x38] sm:$0xff] %v1085
          %1102 = vst [vmem:[#allocation3 + $0x40] sm:$0xff] %v1086
          %1103 = vst [vmem:[#allocation3 + $0x48] sm:$0xff] %v1087
          %1104 = vst [vmem:[#allocation3 + $0x50] sm:$0xff] %v1088
          %1105 = vst [vmem:[#allocation3 + $0x58] sm:$0xff] %v1089
          %1106 = vst [vmem:[#allocation3 + $0x60] sm:$0xff] %v1090
          %1107 = vst [vmem:[#allocation3 + $0x68] sm:$0xff] %v1091
          %1108 = vst [vmem:[#allocation3 + $0x70] sm:$0xff] %v1092
          %1109 = vst [vmem:[#allocation3 + $0x78] sm:$0xff] %v1093
        $region64: #{gcn_forward.3} parent=58 // loop_footer
          %s931 = sadd.s32 1, %s927
        $region65: #{gcn_forward.3} parent=58 // loop_footer_branch
          %926 = sbr.rel target = $region61
        $region66: #{gcn_forward.3} parent=58 // loop_exit
          _
        %v1110 = vld [vmem:[#allocation3] sm:$0xff]
        %v1111 = vld [vmem:[#allocation3 + $0x8] sm:$0xff]
        %v1112 = vld [vmem:[#allocation3 + $0x10] sm:$0xff]
        %v1113 = vld [vmem:[#allocation3 + $0x18] sm:$0xff]
        %v1114 = vld [vmem:[#allocation3 + $0x20] sm:$0xff]
        %v1115 = vld [vmem:[#allocation3 + $0x28] sm:$0xff]
        %v1116 = vld [vmem:[#allocation3 + $0x30] sm:$0xff]
        %v1117 = vld [vmem:[#allocation3 + $0x38] sm:$0xff]
        %v1118 = vld [vmem:[#allocation3 + $0x40] sm:$0xff]
        %v1119 = vld [vmem:[#allocation3 + $0x48] sm:$0xff]
        %v1120 = vld [vmem:[#allocation3 + $0x50] sm:$0xff]
        %v1121 = vld [vmem:[#allocation3 + $0x58] sm:$0xff]
        %v1122 = vld [vmem:[#allocation3 + $0x60] sm:$0xff]
        %v1123 = vld [vmem:[#allocation3 + $0x68] sm:$0xff]
        %v1124 = vld [vmem:[#allocation3 + $0x70] sm:$0xff]
        %v1125 = vld [vmem:[#allocation3 + $0x78] sm:$0xff]
        %1127 = vset.pattern.permute.xlu0 0
        %1128 = vperm.xlu0 %1127, %v274
        %v1129 = vpop.permute.xlu0 %1128
        %1132 = vset.pattern.permute.xlu0 0
        %1133 = vperm.xlu0 %1132, %v275
        %v1134 = vpop.permute.xlu0 %1133
        %1137 = vset.pattern.permute.xlu0 0
        %1138 = vperm.xlu0 %1137, %v276
        %v1139 = vpop.permute.xlu0 %1138
        %1142 = vset.pattern.permute.xlu0 0
        %1143 = vperm.xlu0 %1142, %v277
        %v1144 = vpop.permute.xlu0 %1143
        %1147 = vset.pattern.permute.xlu0 0
        %1148 = vperm.xlu0 %1147, %v278
        %v1149 = vpop.permute.xlu0 %1148
        %1152 = vset.pattern.permute.xlu0 0
        %1153 = vperm.xlu0 %1152, %v279
        %v1154 = vpop.permute.xlu0 %1153
        %1157 = vset.pattern.permute.xlu0 0
        %1158 = vperm.xlu0 %1157, %v280
        %v1159 = vpop.permute.xlu0 %1158
        %1162 = vset.pattern.permute.xlu0 0
        %1163 = vperm.xlu0 %1162, %v281
        %v1164 = vpop.permute.xlu0 %1163
        %1167 = vset.pattern.permute.xlu0 0
        %1168 = vperm.xlu0 %1167, %v282
        %v1169 = vpop.permute.xlu0 %1168
        %1172 = vset.pattern.permute.xlu0 0
        %1173 = vperm.xlu0 %1172, %v283
        %v1174 = vpop.permute.xlu0 %1173
        %1177 = vset.pattern.permute.xlu0 0
        %1178 = vperm.xlu0 %1177, %v284
        %v1179 = vpop.permute.xlu0 %1178
        %1182 = vset.pattern.permute.xlu0 0
        %1183 = vperm.xlu0 %1182, %v285
        %v1184 = vpop.permute.xlu0 %1183
        %1187 = vset.pattern.permute.xlu0 0
        %1188 = vperm.xlu0 %1187, %v286
        %v1189 = vpop.permute.xlu0 %1188
        %1192 = vset.pattern.permute.xlu0 0
        %1193 = vperm.xlu0 %1192, %v287
        %v1194 = vpop.permute.xlu0 %1193
        %1197 = vset.pattern.permute.xlu0 0
        %1198 = vperm.xlu0 %1197, %v288
        %v1199 = vpop.permute.xlu0 %1198
        %1202 = vset.pattern.permute.xlu0 0
        %1203 = vperm.xlu0 %1202, %v289
        %v1204 = vpop.permute.xlu0 %1203
        %v1206 = vmul.f32 %v1129, %v1110
        %v1207 = vmul.f32 %v1134, %v1111
        %v1208 = vmul.f32 %v1139, %v1112
        %v1209 = vmul.f32 %v1144, %v1113
        %v1210 = vmul.f32 %v1149, %v1114
        %v1211 = vmul.f32 %v1154, %v1115
        %v1212 = vmul.f32 %v1159, %v1116
        %v1213 = vmul.f32 %v1164, %v1117
        %v1214 = vmul.f32 %v1169, %v1118
        %v1215 = vmul.f32 %v1174, %v1119
        %v1216 = vmul.f32 %v1179, %v1120
        %v1217 = vmul.f32 %v1184, %v1121
        %v1218 = vmul.f32 %v1189, %v1122
        %v1219 = vmul.f32 %v1194, %v1123
        %v1220 = vmul.f32 %v1199, %v1124
        %v1221 = vmul.f32 %v1204, %v1125
        %v1222 = vld [vmem:[%s5] sm:$0x1]
        %v1224 = vlaneseq
        %v1225 = vshrl.u32 %v1224, 7
        %v1226 = vsub.s32 0, %v1225
        %v1227 = vrot.slane %v1222, %v1226
        %v1229 = vadd.f32 %v1206, %v1227
        %v1230 = vadd.f32 %v1207, %v1227
        %v1231 = vadd.f32 %v1208, %v1227
        %v1232 = vadd.f32 %v1209, %v1227
        %v1233 = vadd.f32 %v1210, %v1227
        %v1234 = vadd.f32 %v1211, %v1227
        %v1235 = vadd.f32 %v1212, %v1227
        %v1236 = vadd.f32 %v1213, %v1227
        %v1237 = vadd.f32 %v1214, %v1227
        %v1238 = vadd.f32 %v1215, %v1227
        %v1239 = vadd.f32 %v1216, %v1227
        %v1240 = vadd.f32 %v1217, %v1227
        %v1241 = vadd.f32 %v1218, %v1227
        %v1242 = vadd.f32 %v1219, %v1227
        %v1243 = vadd.f32 %v1220, %v1227
        %v1244 = vadd.f32 %v1221, %v1227
        %v1245 = vlaneseq
        %v1246 = vand.u32 %v1245, 127
        %vm1247 = vcmp.lt.s32.totalorder %v1246, 8
        %v1248 = vsel %vm1247, %v1229, -inf
        %v1249 = vsel %vm1247, %v1230, -inf
        %v1250 = vsel %vm1247, %v1231, -inf
        %v1251 = vsel %vm1247, %v1232, -inf
        %v1252 = vsel %vm1247, %v1233, -inf
        %v1253 = vsel %vm1247, %v1234, -inf
        %v1254 = vsel %vm1247, %v1235, -inf
        %v1255 = vsel %vm1247, %v1236, -inf
        %v1256 = vsel %vm1247, %v1237, -inf
        %v1257 = vsel %vm1247, %v1238, -inf
        %v1258 = vsel %vm1247, %v1239, -inf
        %v1259 = vsel %vm1247, %v1240, -inf
        %v1260 = vsel %vm1247, %v1241, -inf
        %v1261 = vsel %vm1247, %v1242, -inf
        %v1262 = vsel %vm1247, %v1243, -inf
        %v1263 = vsel %vm1247, %v1244, -inf
        %1264 = vmax.xlane.f32.xlu0 %v1248
        %v1265 = vpop.xlane.xlu0 %1264
        %1266 = vmax.xlane.f32.xlu0 %v1249
        %v1267 = vpop.xlane.xlu0 %1266
        %1268 = vmax.xlane.f32.xlu0 %v1250
        %v1269 = vpop.xlane.xlu0 %1268
        %1270 = vmax.xlane.f32.xlu0 %v1251
        %v1271 = vpop.xlane.xlu0 %1270
        %1272 = vmax.xlane.f32.xlu0 %v1252
        %v1273 = vpop.xlane.xlu0 %1272
        %1274 = vmax.xlane.f32.xlu0 %v1253
        %v1275 = vpop.xlane.xlu0 %1274
        %1276 = vmax.xlane.f32.xlu0 %v1254
        %v1277 = vpop.xlane.xlu0 %1276
        %1278 = vmax.xlane.f32.xlu0 %v1255
        %v1279 = vpop.xlane.xlu0 %1278
        %1280 = vmax.xlane.f32.xlu0 %v1256
        %v1281 = vpop.xlane.xlu0 %1280
        %1282 = vmax.xlane.f32.xlu0 %v1257
        %v1283 = vpop.xlane.xlu0 %1282
        %1284 = vmax.xlane.f32.xlu0 %v1258
        %v1285 = vpop.xlane.xlu0 %1284
        %1286 = vmax.xlane.f32.xlu0 %v1259
        %v1287 = vpop.xlane.xlu0 %1286
        %1288 = vmax.xlane.f32.xlu0 %v1260
        %v1289 = vpop.xlane.xlu0 %1288
        %1290 = vmax.xlane.f32.xlu0 %v1261
        %v1291 = vpop.xlane.xlu0 %1290
        %1292 = vmax.xlane.f32.xlu0 %v1262
        %v1293 = vpop.xlane.xlu0 %1292
        %1294 = vmax.xlane.f32.xlu0 %v1263
        %v1295 = vpop.xlane.xlu0 %1294
        %v1296 = vsub.f32 %v1229, %v1265
        %v1297 = vsub.f32 %v1230, %v1267
        %v1298 = vsub.f32 %v1231, %v1269
        %v1299 = vsub.f32 %v1232, %v1271
        %v1300 = vsub.f32 %v1233, %v1273
        %v1301 = vsub.f32 %v1234, %v1275
        %v1302 = vsub.f32 %v1235, %v1277
        %v1303 = vsub.f32 %v1236, %v1279
        %v1304 = vsub.f32 %v1237, %v1281
        %v1305 = vsub.f32 %v1238, %v1283
        %v1306 = vsub.f32 %v1239, %v1285
        %v1307 = vsub.f32 %v1240, %v1287
        %v1308 = vsub.f32 %v1241, %v1289
        %v1309 = vsub.f32 %v1242, %v1291
        %v1310 = vsub.f32 %v1243, %v1293
        %v1311 = vsub.f32 %v1244, %v1295
        %v1312 = vmul.f32 %v1296, 1.442695
        %v1313 = vpow.pop %v1312
        %v1314 = vmul.f32 %v1297, 1.442695
        %v1315 = vpow.pop %v1314
        %v1316 = vmul.f32 %v1298, 1.442695
        %v1317 = vpow.pop %v1316
        %v1318 = vmul.f32 %v1299, 1.442695
        %v1319 = vpow.pop %v1318
        %v1320 = vmul.f32 %v1300, 1.442695
        %v1321 = vpow.pop %v1320
        %v1322 = vmul.f32 %v1301, 1.442695
        %v1323 = vpow.pop %v1322
        %v1324 = vmul.f32 %v1302, 1.442695
        %v1325 = vpow.pop %v1324
        %v1326 = vmul.f32 %v1303, 1.442695
        %v1327 = vpow.pop %v1326
        %v1328 = vmul.f32 %v1304, 1.442695
        %v1329 = vpow.pop %v1328
        %v1330 = vmul.f32 %v1305, 1.442695
        %v1331 = vpow.pop %v1330
        %v1332 = vmul.f32 %v1306, 1.442695
        %v1333 = vpow.pop %v1332
        %v1334 = vmul.f32 %v1307, 1.442695
        %v1335 = vpow.pop %v1334
        %v1336 = vmul.f32 %v1308, 1.442695
        %v1337 = vpow.pop %v1336
        %v1338 = vmul.f32 %v1309, 1.442695
        %v1339 = vpow.pop %v1338
        %v1340 = vmul.f32 %v1310, 1.442695
        %v1341 = vpow.pop %v1340
        %v1342 = vmul.f32 %v1311, 1.442695
        %v1343 = vpow.pop %v1342
        %v1344 = vsel %vm1247, %v1313, 0.0
        %v1345 = vsel %vm1247, %v1315, 0.0
        %v1346 = vsel %vm1247, %v1317, 0.0
        %v1347 = vsel %vm1247, %v1319, 0.0
        %v1348 = vsel %vm1247, %v1321, 0.0
        %v1349 = vsel %vm1247, %v1323, 0.0
        %v1350 = vsel %vm1247, %v1325, 0.0
        %v1351 = vsel %vm1247, %v1327, 0.0
        %v1352 = vsel %vm1247, %v1329, 0.0
        %v1353 = vsel %vm1247, %v1331, 0.0
        %v1354 = vsel %vm1247, %v1333, 0.0
        %v1355 = vsel %vm1247, %v1335, 0.0
        %v1356 = vsel %vm1247, %v1337, 0.0
        %v1357 = vsel %vm1247, %v1339, 0.0
        %v1358 = vsel %vm1247, %v1341, 0.0
        %v1359 = vsel %vm1247, %v1343, 0.0
        %1360 = vadd.xlane.f32.xlu0 %v1344
        %v1361 = vpop.xlane.xlu0 %1360
        %1362 = vadd.xlane.f32.xlu0 %v1345
        %v1363 = vpop.xlane.xlu0 %1362
        %1364 = vadd.xlane.f32.xlu0 %v1346
        %v1365 = vpop.xlane.xlu0 %1364
        %1366 = vadd.xlane.f32.xlu0 %v1347
        %v1367 = vpop.xlane.xlu0 %1366
        %1368 = vadd.xlane.f32.xlu0 %v1348
        %v1369 = vpop.xlane.xlu0 %1368
        %1370 = vadd.xlane.f32.xlu0 %v1349
        %v1371 = vpop.xlane.xlu0 %1370
        %1372 = vadd.xlane.f32.xlu0 %v1350
        %v1373 = vpop.xlane.xlu0 %1372
        %1374 = vadd.xlane.f32.xlu0 %v1351
        %v1375 = vpop.xlane.xlu0 %1374
        %1376 = vadd.xlane.f32.xlu0 %v1352
        %v1377 = vpop.xlane.xlu0 %1376
        %1378 = vadd.xlane.f32.xlu0 %v1353
        %v1379 = vpop.xlane.xlu0 %1378
        %1380 = vadd.xlane.f32.xlu0 %v1354
        %v1381 = vpop.xlane.xlu0 %1380
        %1382 = vadd.xlane.f32.xlu0 %v1355
        %v1383 = vpop.xlane.xlu0 %1382
        %1384 = vadd.xlane.f32.xlu0 %v1356
        %v1385 = vpop.xlane.xlu0 %1384
        %1386 = vadd.xlane.f32.xlu0 %v1357
        %v1387 = vpop.xlane.xlu0 %1386
        %1388 = vadd.xlane.f32.xlu0 %v1358
        %v1389 = vpop.xlane.xlu0 %1388
        %1390 = vadd.xlane.f32.xlu0 %v1359
        %v1391 = vpop.xlane.xlu0 %1390
        %v1392 = vlog2.pop %v1361
        %v1393 = vmul.f32 %v1392, 0.6931472
        %v1394 = vlog2.pop %v1363
        %v1395 = vmul.f32 %v1394, 0.6931472
        %v1396 = vlog2.pop %v1365
        %v1397 = vmul.f32 %v1396, 0.6931472
        %v1398 = vlog2.pop %v1367
        %v1399 = vmul.f32 %v1398, 0.6931472
        %v1400 = vlog2.pop %v1369
        %v1401 = vmul.f32 %v1400, 0.6931472
        %v1402 = vlog2.pop %v1371
        %v1403 = vmul.f32 %v1402, 0.6931472
        %v1404 = vlog2.pop %v1373
        %v1405 = vmul.f32 %v1404, 0.6931472
        %v1406 = vlog2.pop %v1375
        %v1407 = vmul.f32 %v1406, 0.6931472
        %v1408 = vlog2.pop %v1377
        %v1409 = vmul.f32 %v1408, 0.6931472
        %v1410 = vlog2.pop %v1379
        %v1411 = vmul.f32 %v1410, 0.6931472
        %v1412 = vlog2.pop %v1381
        %v1413 = vmul.f32 %v1412, 0.6931472
        %v1414 = vlog2.pop %v1383
        %v1415 = vmul.f32 %v1414, 0.6931472
        %v1416 = vlog2.pop %v1385
        %v1417 = vmul.f32 %v1416, 0.6931472
        %v1418 = vlog2.pop %v1387
        %v1419 = vmul.f32 %v1418, 0.6931472
        %v1420 = vlog2.pop %v1389
        %v1421 = vmul.f32 %v1420, 0.6931472
        %v1422 = vlog2.pop %v1391
        %v1423 = vmul.f32 %v1422, 0.6931472
        %v1424 = vsub.f32 %v1296, %v1393
        %v1425 = vsub.f32 %v1297, %v1395
        %v1426 = vsub.f32 %v1298, %v1397
        %v1427 = vsub.f32 %v1299, %v1399
        %v1428 = vsub.f32 %v1300, %v1401
        %v1429 = vsub.f32 %v1301, %v1403
        %v1430 = vsub.f32 %v1302, %v1405
        %v1431 = vsub.f32 %v1303, %v1407
        %v1432 = vsub.f32 %v1304, %v1409
        %v1433 = vsub.f32 %v1305, %v1411
        %v1434 = vsub.f32 %v1306, %v1413
        %v1435 = vsub.f32 %v1307, %v1415
        %v1436 = vsub.f32 %v1308, %v1417
        %v1437 = vsub.f32 %v1309, %v1419
        %v1438 = vsub.f32 %v1310, %v1421
        %v1439 = vsub.f32 %v1311, %v1423
        %1440 = vst [vmem:[%s269] sm:$0xff] %v1424
        %1441 = vst [vmem:[%s269 + $0x8] sm:$0xff] %v1425
        %1442 = vst [vmem:[%s269 + $0x10] sm:$0xff] %v1426
        %1443 = vst [vmem:[%s269 + $0x18] sm:$0xff] %v1427
        %1444 = vst [vmem:[%s269 + $0x20] sm:$0xff] %v1428
        %1445 = vst [vmem:[%s269 + $0x28] sm:$0xff] %v1429
        %1446 = vst [vmem:[%s269 + $0x30] sm:$0xff] %v1430
        %1447 = vst [vmem:[%s269 + $0x38] sm:$0xff] %v1431
        %1448 = vst [vmem:[%s269 + $0x40] sm:$0xff] %v1432
        %1449 = vst [vmem:[%s269 + $0x48] sm:$0xff] %v1433
        %1450 = vst [vmem:[%s269 + $0x50] sm:$0xff] %v1434
        %1451 = vst [vmem:[%s269 + $0x58] sm:$0xff] %v1435
        %1452 = vst [vmem:[%s269 + $0x60] sm:$0xff] %v1436
        %1453 = vst [vmem:[%s269 + $0x68] sm:$0xff] %v1437
        %1454 = vst [vmem:[%s269 + $0x70] sm:$0xff] %v1438
        %1455 = vst [vmem:[%s269 + $0x78] sm:$0xff] %v1439
      $region59: #{gcn_forward.3} parent=43 // pred_fallthru
        _
      %s1456 = smul.u32 %s22, %s21
      %s1457 = smul.u32 16, %s1456
      %p1458 = scmp.lt.s32.totalorder %s1457, 31
      %s1459 = scalar_select %p1458, %s1457, 31
      %s1460 = smul.addr %s1459, 8
      %s1461 = scalar_lea.vmem %s6, %s1460
      // Predicated region
      $region67: #{gcn_forward.3} parent=43 // pred_check
        %p1462 = pneg %p180
      $region68: #{gcn_forward.3} parent=43 // pred_check_branch
        %1464 = sbr.rel (%p1462) target = $region70
      $region69: #{gcn_forward.3} parent=43 // pred_region
        %s1465 = smul.u32 %s22, %s21
        %s1466 = smul.u32 16, %s1465
      $region70: #{gcn_forward.3} parent=43 // pred_fallthru
        _
    $region44: #{gcn_forward.3} parent=5 // pred_fallthru
      _
    %p1467 = scmp.le.s32.totalorder 2, %s12
    // Predicated region
    $region71: #{gcn_forward.3} parent=5 // pred_check
      %p1468 = pneg %p1467
    $region72: #{gcn_forward.3} parent=5 // pred_check_branch
      %1470 = sbr.rel (%p1468) target = $region74
    $region73: #{gcn_forward.3} parent=5 // pred_region
      %s1471 = ssub.s32 %s12, 2
      // Predicated region
      $region75: #{gcn_forward.3} parent=73 // pred_check
        %p1472 = pneg %p186
      $region76: #{gcn_forward.3} parent=73 // pred_check_branch
        %1474 = sbr.rel (%p1472) target = $region78
      $region77: #{gcn_forward.3} parent=73 // pred_region
        %s1475 = smul.u32 %s24, %s23
        %s1476 = smul.u32 16, %s1475
        %p1477 = scmp.lt.s32.totalorder %s1476, 31
        %s1478 = scalar_select %p1477, %s1476, 31
        %s1479 = smul.addr %s1478, 8
        %s1480 = scalar_lea.vmem %s6, %s1479
      $region78: #{gcn_forward.3} parent=73 // pred_fallthru
        _
    $region74: #{gcn_forward.3} parent=5 // pred_fallthru
      _
  $region6: #{gcn_forward.3} parent=0 // loop_footer
    %s16 = sadd.s32 1, %s12
  $region7: #{gcn_forward.3} parent=0 // loop_footer_branch
    %11 = sbr.rel target = $region3
  $region8: #{gcn_forward.3} parent=0 // loop_exit
    _

</llo_original>
